<compile_context>
chip_gen: v5e
topology: v5e:2x2
jax: 0.10.0
libtpu: 0.0.40
codegen_flags: <defaults>
</compile_context>

<pallas_src>
import functools

import numpy as np
import jax
import jax.numpy as jnp
from jax.experimental import pallas as pl
from jax.experimental.pallas import tpu as pltpu


def _convgru_kernel(xh_ref, w1_ref, w2_ref, out_ref, k1_ref, k2_ref,
                    *, H, Wp, Cin, Ch):
    """One batch element per grid step (channels-on-sublanes, spatial-on-lanes).

    xh_ref : (Cin+Ch, (H+3)*Wp)   zero-padded, flattened [x; h] slab
    w1_ref : (3*Ch, 9*blk1 + 8)   fused [reset; update; cand_x] weights + bias column
    w2_ref : (Ch, 9*Ch)           cand_h weights applied to reset*h
    out_ref: (Ch, H*Wp)           "wide" output (junk columns dropped in the wrapper)
    k1_ref : VMEM (9*blk1+8, H*Wp)  im2col of [x; h]   (blk1 = Cin+Ch rounded up to 8)
    k2_ref : VMEM (9*Ch, H*Wp)      im2col of padded reset*h
    """
    f32 = jnp.float32
    Cxh = Cin + Ch
    Nw = H * Wp
    blk1 = ((Cxh + 7) // 8) * 8
    bias_row = 9 * blk1

    # Per-step scratch init (cheap; keeps every grid step self-contained so the batch
    # axis can be megacore-"parallel").  Padding rows carry zero weights but must be finite.
    k1_ref[...] = jnp.zeros_like(k1_ref)
    k1_ref[bias_row:bias_row + 1, :] = jnp.ones((1, Nw), f32)   # ones row -> folded biases

    # --- im2col of the combined [x; h] slab: tap k = (dy, dx) occupies rows [blk1*k, blk1*k+Cxh)
    for dy in range(3):
        for dx in range(3):
            k = 3 * dy + dx
            off = dy * Wp + dx
            k1_ref[blk1 * k:blk1 * k + Cxh, :] = xh_ref[:, off:off + Nw]

    # --- conv #1: reset / update / candidate-x in ONE big-K matmul (biases included) ---
    g = jnp.dot(w1_ref[...], k1_ref[...], preferred_element_type=f32)   # (3*Ch, Nw)
    reset = jax.nn.sigmoid(g[:Ch, :])
    update = jax.nn.sigmoid(g[Ch:2 * Ch, :])
    c_x = g[2 * Ch:3 * Ch, :]                                           # already has b_can

    # --- im2col of the zero-padded (reset * h) slab for conv #2 ---
    # Shifted reset comes from an XLU lane roll of the wide reset map; the corresponding
    # h factor is read straight from the padded slab, whose zero border makes every lane
    # that wrapped (or is a junk column) contribute exactly zero.
    for dy in range(3):
        for dx in range(3):
            k = 3 * dy + dx
            off = dy * Wp + dx
            r_shift = pltpu.roll(reset, shift=(Wp + 1 - off) % Nw, axis=1)
            k2_ref[Ch * k:Ch * k + Ch, :] = r_shift * xh_ref[Cin:Cxh, off:off + Nw]

    # --- conv #2 + gate blend ---
    c = c_x + jnp.dot(w2_ref[...], k2_ref[...], preferred_element_type=f32)   # (Ch, Nw)
    h_cur = xh_ref[Cin:Cxh, Wp + 1:Wp + 1 + Nw]                               # true h values
    out_ref[...] = ((1.0 - update) * h_cur + update * jnp.tanh(c)).astype(out_ref.dtype)


def conv_gru_cell_pallas(x, h_cur, w_gates, b_gates, w_can, b_can):
    """Forward of ConvGRUCell.  x: (B, Cin, H, W) NCHW (PyTorch convention)."""
    B, Cin, H, W = x.shape
    Ch = w_can.shape[0]
    if h_cur is None:
        h_cur = jnp.zeros((B, Ch, H, W), x.dtype)
    Cxh = Cin + Ch

    # Wp >= W+2 rounded up to a multiple of 8 -> lane-dense output (H*Wp % 128 == 0 for H=16).
    Wp = ((W + 2 + 7) // 8) * 8
    Hp = H + 3                     # 1 top + 2 bottom rows of zero padding (wrap-trick margin)
    Lp = Hp * Wp
    Nw = H * Wp

    blk1 = ((Cxh + 7) // 8) * 8    # per-tap row block in the im2col (sublane aligned)
    K1 = 9 * blk1 + 8              # + bias-ones row (padded to 8 rows)
    K2 = 9 * Ch

    # --- inputs: NCHW is already channel-major, so just concat + pad + flatten (no transpose) ---
    xh = jnp.concatenate([x, h_cur], axis=1).astype(jnp.float32)        # (B, Cxh, H, W)
    xh = jnp.pad(xh, ((0, 0), (0, 0), (1, Hp - H - 1), (1, Wp - W - 1)))
    xh = xh.reshape(B, Cxh, Lp)

    # --- weights: one fused (3*Ch, K1) matrix (reset|update|cand_x) with biases as a column ---
    wg = jnp.asarray(w_gates, jnp.float32)                              # (2Ch, Cxh, 3, 3)
    wc = jnp.asarray(w_can, jnp.float32)                                # (Ch,  Cxh, 3, 3)
    wcx = jnp.pad(wc[:, :Cin], ((0, 0), (0, Ch), (0, 0), (0, 0)))       # cand conv, x part only
    w1 = jnp.concatenate([wg, wcx], axis=0)                             # (3Ch, Cxh, 3, 3)
    w1 = jnp.transpose(w1, (0, 2, 3, 1))                                # (3Ch, 3, 3, Cxh)
    w1 = jnp.pad(w1, ((0, 0), (0, 0), (0, 0), (0, blk1 - Cxh)))         # zero pad to blk1
    w1 = w1.reshape(3 * Ch, 9 * blk1)
    bias = jnp.concatenate([jnp.asarray(b_gates, jnp.float32),
                            jnp.asarray(b_can, jnp.float32)])[:, None]  # (3Ch, 1)
    w1 = jnp.concatenate([w1, bias, jnp.zeros((3 * Ch, 7), jnp.float32)], axis=1)  # (3Ch, K1)

    w2 = jnp.transpose(wc[:, Cin:], (0, 2, 3, 1)).reshape(Ch, 9 * Ch)   # (Ch, K2)

    kernel = functools.partial(_convgru_kernel, H=H, Wp=Wp, Cin=Cin, Ch=Ch)

    out_wide = pl.pallas_call(
        kernel,
        out_shape=jax.ShapeDtypeStruct((B, Ch, Nw), jnp.float32),
        grid=(B,),
        in_specs=[
            pl.BlockSpec((None, Cxh, Lp), lambda b: (b, 0, 0)),
            pl.BlockSpec((3 * Ch, K1), lambda b: (0, 0)),
            pl.BlockSpec((Ch, K2), lambda b: (0, 0)),
        ],
        out_specs=pl.BlockSpec((None, Ch, Nw), lambda b: (b, 0, 0)),
        scratch_shapes=[
            pltpu.VMEM((K1, Nw), jnp.float32),
            pltpu.VMEM((K2, Nw), jnp.float32),
        ],
        compiler_params=pltpu.CompilerParams(dimension_semantics=("parallel",)),
    )(xh, w1, w2)

    # drop the junk padding columns; layout is already NCHW
    out = out_wide.reshape(B, Ch, H, Wp)[:, :, :, :W]
    return out.astype(x.dtype)


# ---------------------- pure-JAX reference (mirrors the PyTorch forward) ----------------------
def conv_gru_cell_ref(x, h_cur, w_gates, b_gates, w_can, b_can):
    Ch = w_can.shape[0]
    if h_cur is None:
        h_cur = jnp.zeros((x.shape[0], Ch, x.shape[2], x.shape[3]), x.dtype)

    def conv(inp, w, b):
        out = jax.lax.conv_general_dilated(
            inp, w, window_strides=(1, 1), padding=((1, 1), (1, 1)),
            dimension_numbers=('NCHW', 'OIHW', 'NCHW'),
            precision=jax.lax.Precision.HIGHEST)
        return out + b[None, :, None, None]

    combined = jnp.concatenate([x, h_cur], axis=1)
    cc = conv(combined, w_gates, b_gates)
    gamma, beta = cc[:, :Ch], cc[:, Ch:]
    reset_gate = jax.nn.sigmoid(gamma)
    update_gate = jax.nn.sigmoid(beta)
    combined2 = jnp.concatenate([x, reset_gate * h_cur], axis=1)
    cnm = jnp.tanh(conv(combined2, w_can, b_can))
    return (1 - update_gate) * h_cur + update_gate * cnm


if __name__ == "__main__":
    B, Cin, Ch, H, W = 2, 2, 16, 16, 16   # input_size=(16,16), input_dim=2, hidden_size=16

    key = jax.random.PRNGKey(0)
    ks = jax.random.split(key, 6)
    fan_in = (Cin + Ch) * 3 * 3
    bound = 1.0 / np.sqrt(fan_in)
    w_gates = jax.random.uniform(ks[0], (2 * Ch, Cin + Ch, 3, 3), jnp.float32, -bound, bound)
    b_gates = jax.random.uniform(ks[1], (2 * Ch,), jnp.float32, -bound, bound)
    w_can = jax.random.uniform(ks[2], (Ch, Cin + Ch, 3, 3), jnp.float32, -bound, bound)
    b_can = jax.random.uniform(ks[3], (Ch,), jnp.float32, -bound, bound)

    x = jax.random.normal(ks[4], (B, Cin, H, W), jnp.float32)
    h0 = jax.random.normal(ks[5], (B, Ch, H, W), jnp.float32)

    # with an explicit previous state
    out = jax.block_until_ready(conv_gru_cell_pallas(x, h0, w_gates, b_gates, w_can, b_can))
    ref = conv_gru_cell_ref(x, h0, w_gates, b_gates, w_can, b_can)
    np.testing.assert_allclose(np.asarray(out), np.asarray(ref), rtol=2e-3, atol=2e-3)

    # cur_state=None path (zero hidden state), as in the PyTorch forward default
    out0 = jax.block_until_ready(conv_gru_cell_pallas(x, None, w_gates, b_gates, w_can, b_can))
    ref0 = conv_gru_cell_ref(x, None, w_gates, b_gates, w_can, b_can)
    np.testing.assert_allclose(np.asarray(out0), np.asarray(ref0), rtol=2e-3, atol=2e-3)

    print("KERNEL_OK")
</pallas_src>

<mosaic_0001>
module attributes {stable_mosaic.version = 11 : i64} {
  func.func @_convgru_kernel(%arg0: i32, %arg1: memref<1x18x456xf32, #tpu.memory_space<vmem>>, %arg2: memref<48x224xf32, #tpu.memory_space<vmem>>, %arg3: memref<16x144xf32, #tpu.memory_space<vmem>>, %arg4: memref<1x16x384xf32, #tpu.memory_space<vmem>>, %arg5: memref<224x384xf32, #tpu.memory_space<vmem>>, %arg6: memref<144x384xf32, #tpu.memory_space<vmem>>) attributes {dimension_semantics = [#tpu.dimension_semantics<parallel>], iteration_bounds = array<i64: 2>, scalar_prefetch = 0 : i64, scratch_operands = 2 : i64, tpu.core_type = #tpu.core_type<tc>, window_params = [{transform_indices = @transform_0, window_bounds = array<i64: 1, 18, 456>}, {pipeline_mode = #tpu.pipeline_mode<synchronous>, transform_indices = @transform_1, window_bounds = array<i64: 48, 224>}, {pipeline_mode = #tpu.pipeline_mode<synchronous>, transform_indices = @transform_2, window_bounds = array<i64: 16, 144>}, {transform_indices = @transform_3, window_bounds = array<i64: 1, 16, 384>}]} {
    %cst = arith.constant 0.000000e+00 : f32
    %0 = vector.broadcast %cst : f32 to vector<224x384xf32>
    %c0 = arith.constant 0 : index
    %c0_0 = arith.constant 0 : index
    %1 = vector.load %arg5[%c0, %c0_0] : memref<224x384xf32, #tpu.memory_space<vmem>>, vector<224x384xf32>
    tpu.vector_store %arg5[%c0, %c0_0], %0 {strides = array<i32>} : memref<224x384xf32, #tpu.memory_space<vmem>>, vector<224x384xf32>,
    %cst_1 = arith.constant 1.000000e+00 : f32
    %2 = vector.broadcast %cst_1 : f32 to vector<1x384xf32>
    %c216 = arith.constant 216 : index
    %c0_2 = arith.constant 0 : index
    %3 = vector.load %arg5[%c216, %c0_2] : memref<224x384xf32, #tpu.memory_space<vmem>>, vector<1x384xf32>
    tpu.vector_store %arg5[%c216, %c0_2], %2 {strides = array<i32>} : memref<224x384xf32, #tpu.memory_space<vmem>>, vector<1x384xf32>,
    %c0_3 = arith.constant 0 : index
    %c0_4 = arith.constant 0 : index
    %c0_5 = arith.constant 0 : index
    %4 = vector.load %arg1[%c0_3, %c0_4, %c0_5] : memref<1x18x456xf32, #tpu.memory_space<vmem>>, vector<1x18x384xf32>
    %5 = vector.shape_cast %4 : vector<1x18x384xf32> to vector<18x384xf32>
    %c0_6 = arith.constant 0 : index
    %c0_7 = arith.constant 0 : index
    %6 = vector.load %arg5[%c0_6, %c0_7] : memref<224x384xf32, #tpu.memory_space<vmem>>, vector<18x384xf32>
    tpu.vector_store %arg5[%c0_6, %c0_7], %5 {strides = array<i32>} : memref<224x384xf32, #tpu.memory_space<vmem>>, vector<18x384xf32>,
    %c0_8 = arith.constant 0 : index
    %c0_9 = arith.constant 0 : index
    %c1 = arith.constant 1 : index
    %7 = vector.load %arg1[%c0_8, %c0_9, %c1] : memref<1x18x456xf32, #tpu.memory_space<vmem>>, vector<1x18x384xf32>
    %8 = vector.shape_cast %7 : vector<1x18x384xf32> to vector<18x384xf32>
    %c24 = arith.constant 24 : index
    %c0_10 = arith.constant 0 : index
    %9 = vector.load %arg5[%c24, %c0_10] : memref<224x384xf32, #tpu.memory_space<vmem>>, vector<18x384xf32>
    tpu.vector_store %arg5[%c24, %c0_10], %8 {strides = array<i32>} : memref<224x384xf32, #tpu.memory_space<vmem>>, vector<18x384xf32>,
    %c0_11 = arith.constant 0 : index
    %c0_12 = arith.constant 0 : index
    %c2 = arith.constant 2 : index
    %10 = vector.load %arg1[%c0_11, %c0_12, %c2] : memref<1x18x456xf32, #tpu.memory_space<vmem>>, vector<1x18x384xf32>
    %11 = vector.shape_cast %10 : vector<1x18x384xf32> to vector<18x384xf32>
    %c48 = arith.constant 48 : index
    %c0_13 = arith.constant 0 : index
    %12 = vector.load %arg5[%c48, %c0_13] : memref<224x384xf32, #tpu.memory_space<vmem>>, vector<18x384xf32>
    tpu.vector_store %arg5[%c48, %c0_13], %11 {strides = array<i32>} : memref<224x384xf32, #tpu.memory_space<vmem>>, vector<18x384xf32>,
    %c0_14 = arith.constant 0 : index
    %c0_15 = arith.constant 0 : index
    %c24_16 = arith.constant 24 : index
    %13 = vector.load %arg1[%c0_14, %c0_15, %c24_16] : memref<1x18x456xf32, #tpu.memory_space<vmem>>, vector<1x18x384xf32>
    %14 = vector.shape_cast %13 : vector<1x18x384xf32> to vector<18x384xf32>
    %c72 = arith.constant 72 : index
    %c0_17 = arith.constant 0 : index
    %15 = vector.load %arg5[%c72, %c0_17] : memref<224x384xf32, #tpu.memory_space<vmem>>, vector<18x384xf32>
    tpu.vector_store %arg5[%c72, %c0_17], %14 {strides = array<i32>} : memref<224x384xf32, #tpu.memory_space<vmem>>, vector<18x384xf32>,
    %c0_18 = arith.constant 0 : index
    %c0_19 = arith.constant 0 : index
    %c25 = arith.constant 25 : index
    %16 = vector.load %arg1[%c0_18, %c0_19, %c25] : memref<1x18x456xf32, #tpu.memory_space<vmem>>, vector<1x18x384xf32>
    %17 = vector.shape_cast %16 : vector<1x18x384xf32> to vector<18x384xf32>
    %c96 = arith.constant 96 : index
    %c0_20 = arith.constant 0 : index
    %18 = vector.load %arg5[%c96, %c0_20] : memref<224x384xf32, #tpu.memory_space<vmem>>, vector<18x384xf32>
    tpu.vector_store %arg5[%c96, %c0_20], %17 {strides = array<i32>} : memref<224x384xf32, #tpu.memory_space<vmem>>, vector<18x384xf32>,
    %c0_21 = arith.constant 0 : index
    %c0_22 = arith.constant 0 : index
    %c26 = arith.constant 26 : index
    %19 = vector.load %arg1[%c0_21, %c0_22, %c26] : memref<1x18x456xf32, #tpu.memory_space<vmem>>, vector<1x18x384xf32>
    %20 = vector.shape_cast %19 : vector<1x18x384xf32> to vector<18x384xf32>
    %c120 = arith.constant 120 : index
    %c0_23 = arith.constant 0 : index
    %21 = vector.load %arg5[%c120, %c0_23] : memref<224x384xf32, #tpu.memory_space<vmem>>, vector<18x384xf32>
    tpu.vector_store %arg5[%c120, %c0_23], %20 {strides = array<i32>} : memref<224x384xf32, #tpu.memory_space<vmem>>, vector<18x384xf32>,
    %c0_24 = arith.constant 0 : index
    %c0_25 = arith.constant 0 : index
    %c48_26 = arith.constant 48 : index
    %22 = vector.load %arg1[%c0_24, %c0_25, %c48_26] : memref<1x18x456xf32, #tpu.memory_space<vmem>>, vector<1x18x384xf32>
    %23 = vector.shape_cast %22 : vector<1x18x384xf32> to vector<18x384xf32>
    %c144 = arith.constant 144 : index
    %c0_27 = arith.constant 0 : index
    %24 = vector.load %arg5[%c144, %c0_27] : memref<224x384xf32, #tpu.memory_space<vmem>>, vector<18x384xf32>
    tpu.vector_store %arg5[%c144, %c0_27], %23 {strides = array<i32>} : memref<224x384xf32, #tpu.memory_space<vmem>>, vector<18x384xf32>,
    %c0_28 = arith.constant 0 : index
    %c0_29 = arith.constant 0 : index
    %c49 = arith.constant 49 : index
    %25 = vector.load %arg1[%c0_28, %c0_29, %c49] : memref<1x18x456xf32, #tpu.memory_space<vmem>>, vector<1x18x384xf32>
    %26 = vector.shape_cast %25 : vector<1x18x384xf32> to vector<18x384xf32>
    %c168 = arith.constant 168 : index
    %c0_30 = arith.constant 0 : index
    %27 = vector.load %arg5[%c168, %c0_30] : memref<224x384xf32, #tpu.memory_space<vmem>>, vector<18x384xf32>
    tpu.vector_store %arg5[%c168, %c0_30], %26 {strides = array<i32>} : memref<224x384xf32, #tpu.memory_space<vmem>>, vector<18x384xf32>,
    %c0_31 = arith.constant 0 : index
    %c0_32 = arith.constant 0 : index
    %c50 = arith.constant 50 : index
    %28 = vector.load %arg1[%c0_31, %c0_32, %c50] : memref<1x18x456xf32, #tpu.memory_space<vmem>>, vector<1x18x384xf32>
    %29 = vector.shape_cast %28 : vector<1x18x384xf32> to vector<18x384xf32>
    %c192 = arith.constant 192 : index
    %c0_33 = arith.constant 0 : index
    %30 = vector.load %arg5[%c192, %c0_33] : memref<224x384xf32, #tpu.memory_space<vmem>>, vector<18x384xf32>
    tpu.vector_store %arg5[%c192, %c0_33], %29 {strides = array<i32>} : memref<224x384xf32, #tpu.memory_space<vmem>>, vector<18x384xf32>,
    %c0_34 = arith.constant 0 : index
    %c0_35 = arith.constant 0 : index
    %31 = vector.load %arg2[%c0_34, %c0_35] : memref<48x224xf32, #tpu.memory_space<vmem>>, vector<48x224xf32>
    %c0_36 = arith.constant 0 : index
    %c0_37 = arith.constant 0 : index
    %32 = vector.load %arg5[%c0_36, %c0_37] : memref<224x384xf32, #tpu.memory_space<vmem>>, vector<224x384xf32>
    %cst_38 = arith.constant dense<0.000000e+00> : vector<48x384xf32>
    %33 = tpu.matmul %31, %32, %cst_38 {dimension_numbers = #tpu.dot_dimension_numbers<[1], [0], [0], [1], [0, 0, 1, 1], [], []>} : vector<48x224xf32>, vector<224x384xf32>, vector<48x384xf32> -> vector<48x384xf32>
    %34 = vector.extract_strided_slice %33 {offsets = [0, 0], sizes = [16, 384], strides = [1, 1]} : vector<48x384xf32> to vector<16x384xf32>
    %35 = arith.negf %34 : vector<16x384xf32>
    %36 = math.exp %35 : vector<16x384xf32>
    %cst_39 = arith.constant 1.000000e+00 : f32
    %37 = vector.broadcast %cst_39 : f32 to vector<16x384xf32>
    %38 = arith.addf %37, %36 : vector<16x384xf32>
    %39 = arith.divf %37, %38 : vector<16x384xf32>
    %40 = vector.extract_strided_slice %33 {offsets = [16, 0], sizes = [16, 384], strides = [1, 1]} : vector<48x384xf32> to vector<16x384xf32>
    %41 = arith.negf %40 : vector<16x384xf32>
    %42 = math.exp %41 : vector<16x384xf32>
    %cst_40 = arith.constant 1.000000e+00 : f32
    %43 = vector.broadcast %cst_40 : f32 to vector<16x384xf32>
    %44 = arith.addf %43, %42 : vector<16x384xf32>
    %45 = arith.divf %43, %44 : vector<16x384xf32>
    %46 = vector.extract_strided_slice %33 {offsets = [32, 0], sizes = [16, 384], strides = [1, 1]} : vector<48x384xf32> to vector<16x384xf32>
    %c25_i32 = arith.constant 25 : i32
    %47 = tpu.dynamic_rotate %39 by %c25_i32 dim 1 : vector<16x384xf32>, i32 -> vector<16x384xf32>
    %c0_41 = arith.constant 0 : index
    %c2_42 = arith.constant 2 : index
    %c0_43 = arith.constant 0 : index
    %48 = vector.load %arg1[%c0_41, %c2_42, %c0_43] : memref<1x18x456xf32, #tpu.memory_space<vmem>>, vector<1x16x384xf32>
    %49 = vector.shape_cast %48 : vector<1x16x384xf32> to vector<16x384xf32>
    %50 = arith.mulf %47, %49 : vector<16x384xf32>
    %c0_44 = arith.constant 0 : index
    %c0_45 = arith.constant 0 : index
    %51 = vector.load %arg6[%c0_44, %c0_45] : memref<144x384xf32, #tpu.memory_space<vmem>>, vector<16x384xf32>
    tpu.vector_store %arg6[%c0_44, %c0_45], %50 {strides = array<i32>} : memref<144x384xf32, #tpu.memory_space<vmem>>, vector<16x384xf32>,
    %c24_i32 = arith.constant 24 : i32
    %52 = tpu.dynamic_rotate %39 by %c24_i32 dim 1 : vector<16x384xf32>, i32 -> vector<16x384xf32>
    %c0_46 = arith.constant 0 : index
    %c2_47 = arith.constant 2 : index
    %c1_48 = arith.constant 1 : index
    %53 = vector.load %arg1[%c0_46, %c2_47, %c1_48] : memref<1x18x456xf32, #tpu.memory_space<vmem>>, vector<1x16x384xf32>
    %54 = vector.shape_cast %53 : vector<1x16x384xf32> to vector<16x384xf32>
    %55 = arith.mulf %52, %54 : vector<16x384xf32>
    %c16 = arith.constant 16 : index
    %c0_49 = arith.constant 0 : index
    %56 = vector.load %arg6[%c16, %c0_49] : memref<144x384xf32, #tpu.memory_space<vmem>>, vector<16x384xf32>
    tpu.vector_store %arg6[%c16, %c0_49], %55 {strides = array<i32>} : memref<144x384xf32, #tpu.memory_space<vmem>>, vector<16x384xf32>,
    %c23_i32 = arith.constant 23 : i32
    %57 = tpu.dynamic_rotate %39 by %c23_i32 dim 1 : vector<16x384xf32>, i32 -> vector<16x384xf32>
    %c0_50 = arith.constant 0 : index
    %c2_51 = arith.constant 2 : index
    %c2_52 = arith.constant 2 : index
    %58 = vector.load %arg1[%c0_50, %c2_51, %c2_52] : memref<1x18x456xf32, #tpu.memory_space<vmem>>, vector<1x16x384xf32>
    %59 = vector.shape_cast %58 : vector<1x16x384xf32> to vector<16x384xf32>
    %60 = arith.mulf %57, %59 : vector<16x384xf32>
    %c32 = arith.constant 32 : index
    %c0_53 = arith.constant 0 : index
    %61 = vector.load %arg6[%c32, %c0_53] : memref<144x384xf32, #tpu.memory_space<vmem>>, vector<16x384xf32>
    tpu.vector_store %arg6[%c32, %c0_53], %60 {strides = array<i32>} : memref<144x384xf32, #tpu.memory_space<vmem>>, vector<16x384xf32>,
    %c1_i32 = arith.constant 1 : i32
    %62 = tpu.dynamic_rotate %39 by %c1_i32 dim 1 : vector<16x384xf32>, i32 -> vector<16x384xf32>
    %c0_54 = arith.constant 0 : index
    %c2_55 = arith.constant 2 : index
    %c24_56 = arith.constant 24 : index
    %63 = vector.load %arg1[%c0_54, %c2_55, %c24_56] : memref<1x18x456xf32, #tpu.memory_space<vmem>>, vector<1x16x384xf32>
    %64 = vector.shape_cast %63 : vector<1x16x384xf32> to vector<16x384xf32>
    %65 = arith.mulf %62, %64 : vector<16x384xf32>
    %c48_57 = arith.constant 48 : index
    %c0_58 = arith.constant 0 : index
    %66 = vector.load %arg6[%c48_57, %c0_58] : memref<144x384xf32, #tpu.memory_space<vmem>>, vector<16x384xf32>
    tpu.vector_store %arg6[%c48_57, %c0_58], %65 {strides = array<i32>} : memref<144x384xf32, #tpu.memory_space<vmem>>, vector<16x384xf32>,
    %c0_i32 = arith.constant 0 : i32
    %67 = tpu.dynamic_rotate %39 by %c0_i32 dim 1 : vector<16x384xf32>, i32 -> vector<16x384xf32>
    %c0_59 = arith.constant 0 : index
    %c2_60 = arith.constant 2 : index
    %c25_61 = arith.constant 25 : index
    %68 = vector.load %arg1[%c0_59, %c2_60, %c25_61] : memref<1x18x456xf32, #tpu.memory_space<vmem>>, vector<1x16x384xf32>
    %69 = vector.shape_cast %68 : vector<1x16x384xf32> to vector<16x384xf32>
    %70 = arith.mulf %67, %69 : vector<16x384xf32>
    %c64 = arith.constant 64 : index
    %c0_62 = arith.constant 0 : index
    %71 = vector.load %arg6[%c64, %c0_62] : memref<144x384xf32, #tpu.memory_space<vmem>>, vector<16x384xf32>
    tpu.vector_store %arg6[%c64, %c0_62], %70 {strides = array<i32>} : memref<144x384xf32, #tpu.memory_space<vmem>>, vector<16x384xf32>,
    %c383_i32 = arith.constant 383 : i32
    %72 = tpu.dynamic_rotate %39 by %c383_i32 dim 1 : vector<16x384xf32>, i32 -> vector<16x384xf32>
    %c0_63 = arith.constant 0 : index
    %c2_64 = arith.constant 2 : index
    %c26_65 = arith.constant 26 : index
    %73 = vector.load %arg1[%c0_63, %c2_64, %c26_65] : memref<1x18x456xf32, #tpu.memory_space<vmem>>, vector<1x16x384xf32>
    %74 = vector.shape_cast %73 : vector<1x16x384xf32> to vector<16x384xf32>
    %75 = arith.mulf %72, %74 : vector<16x384xf32>
    %c80 = arith.constant 80 : index
    %c0_66 = arith.constant 0 : index
    %76 = vector.load %arg6[%c80, %c0_66] : memref<144x384xf32, #tpu.memory_space<vmem>>, vector<16x384xf32>
    tpu.vector_store %arg6[%c80, %c0_66], %75 {strides = array<i32>} : memref<144x384xf32, #tpu.memory_space<vmem>>, vector<16x384xf32>,
    %c361_i32 = arith.constant 361 : i32
    %77 = tpu.dynamic_rotate %39 by %c361_i32 dim 1 : vector<16x384xf32>, i32 -> vector<16x384xf32>
    %c0_67 = arith.constant 0 : index
    %c2_68 = arith.constant 2 : index
    %c48_69 = arith.constant 48 : index
    %78 = vector.load %arg1[%c0_67, %c2_68, %c48_69] : memref<1x18x456xf32, #tpu.memory_space<vmem>>, vector<1x16x384xf32>
    %79 = vector.shape_cast %78 : vector<1x16x384xf32> to vector<16x384xf32>
    %80 = arith.mulf %77, %79 : vector<16x384xf32>
    %c96_70 = arith.constant 96 : index
    %c0_71 = arith.constant 0 : index
    %81 = vector.load %arg6[%c96_70, %c0_71] : memref<144x384xf32, #tpu.memory_space<vmem>>, vector<16x384xf32>
    tpu.vector_store %arg6[%c96_70, %c0_71], %80 {strides = array<i32>} : memref<144x384xf32, #tpu.memory_space<vmem>>, vector<16x384xf32>,
    %c360_i32 = arith.constant 360 : i32
    %82 = tpu.dynamic_rotate %39 by %c360_i32 dim 1 : vector<16x384xf32>, i32 -> vector<16x384xf32>
    %c0_72 = arith.constant 0 : index
    %c2_73 = arith.constant 2 : index
    %c49_74 = arith.constant 49 : index
    %83 = vector.load %arg1[%c0_72, %c2_73, %c49_74] : memref<1x18x456xf32, #tpu.memory_space<vmem>>, vector<1x16x384xf32>
    %84 = vector.shape_cast %83 : vector<1x16x384xf32> to vector<16x384xf32>
    %85 = arith.mulf %82, %84 : vector<16x384xf32>
    %c112 = arith.constant 112 : index
    %c0_75 = arith.constant 0 : index
    %86 = vector.load %arg6[%c112, %c0_75] : memref<144x384xf32, #tpu.memory_space<vmem>>, vector<16x384xf32>
    tpu.vector_store %arg6[%c112, %c0_75], %85 {strides = array<i32>} : memref<144x384xf32, #tpu.memory_space<vmem>>, vector<16x384xf32>,
    %c359_i32 = arith.constant 359 : i32
    %87 = tpu.dynamic_rotate %39 by %c359_i32 dim 1 : vector<16x384xf32>, i32 -> vector<16x384xf32>
    %c0_76 = arith.constant 0 : index
    %c2_77 = arith.constant 2 : index
    %c50_78 = arith.constant 50 : index
    %88 = vector.load %arg1[%c0_76, %c2_77, %c50_78] : memref<1x18x456xf32, #tpu.memory_space<vmem>>, vector<1x16x384xf32>
    %89 = vector.shape_cast %88 : vector<1x16x384xf32> to vector<16x384xf32>
    %90 = arith.mulf %87, %89 : vector<16x384xf32>
    %c128 = arith.constant 128 : index
    %c0_79 = arith.constant 0 : index
    %91 = vector.load %arg6[%c128, %c0_79] : memref<144x384xf32, #tpu.memory_space<vmem>>, vector<16x384xf32>
    tpu.vector_store %arg6[%c128, %c0_79], %90 {strides = array<i32>} : memref<144x384xf32, #tpu.memory_space<vmem>>, vector<16x384xf32>,
    %c0_80 = arith.constant 0 : index
    %c0_81 = arith.constant 0 : index
    %92 = vector.load %arg3[%c0_80, %c0_81] : memref<16x144xf32, #tpu.memory_space<vmem>>, vector<16x144xf32>
    %c0_82 = arith.constant 0 : index
    %c0_83 = arith.constant 0 : index
    %93 = vector.load %arg6[%c0_82, %c0_83] : memref<144x384xf32, #tpu.memory_space<vmem>>, vector<144x384xf32>
    %cst_84 = arith.constant dense<0.000000e+00> : vector<16x384xf32>
    %94 = tpu.matmul %92, %93, %cst_84 {dimension_numbers = #tpu.dot_dimension_numbers<[1], [0], [0], [1], [0, 0, 1, 1], [], []>} : vector<16x144xf32>, vector<144x384xf32>, vector<16x384xf32> -> vector<16x384xf32>
    %95 = arith.addf %46, %94 : vector<16x384xf32>
    %c0_85 = arith.constant 0 : index
    %c2_86 = arith.constant 2 : index
    %c25_87 = arith.constant 25 : index
    %96 = vector.load %arg1[%c0_85, %c2_86, %c25_87] : memref<1x18x456xf32, #tpu.memory_space<vmem>>, vector<1x16x384xf32>
    %97 = vector.shape_cast %96 : vector<1x16x384xf32> to vector<16x384xf32>
    %cst_88 = arith.constant 1.000000e+00 : f32
    %98 = vector.broadcast %cst_88 : f32 to vector<16x384xf32>
    %99 = arith.subf %98, %45 : vector<16x384xf32>
    %100 = arith.mulf %99, %97 : vector<16x384xf32>
    %101 = math.tanh %95 : vector<16x384xf32>
    %102 = arith.mulf %45, %101 : vector<16x384xf32>
    %103 = arith.addf %100, %102 : vector<16x384xf32>
    %c0_89 = arith.constant 0 : index
    %c0_90 = arith.constant 0 : index
    %c0_91 = arith.constant 0 : index
    %104 = vector.load %arg4[%c0_89, %c0_90, %c0_91] : memref<1x16x384xf32, #tpu.memory_space<vmem>>, vector<1x16x384xf32>
    %105 = vector.shape_cast %104 : vector<1x16x384xf32> to vector<16x384xf32>
    %106 = vector.shape_cast %103 : vector<16x384xf32> to vector<1x16x384xf32>
    tpu.vector_store %arg4[%c0_89, %c0_90, %c0_91], %106 {strides = array<i32>} : memref<1x16x384xf32, #tpu.memory_space<vmem>>, vector<1x16x384xf32>,
    return
  }
  func.func @transform_0(%arg0: i32) -> (i32, i32, i32) {
    %c0_i32 = arith.constant 0 : i32
    %c0_i32_0 = arith.constant 0 : i32
    %c0_i32_1 = arith.constant 0 : i32
    return %arg0, %c0_i32, %c0_i32_0 : i32, i32, i32
  }
  func.func @transform_1(%arg0: i32) -> (i32, i32) {
    %c0_i32 = arith.constant 0 : i32
    %c0_i32_0 = arith.constant 0 : i32
    %c0_i32_1 = arith.constant 0 : i32
    return %c0_i32, %c0_i32_0 : i32, i32
  }
  func.func @transform_2(%arg0: i32) -> (i32, i32) {
    %c0_i32 = arith.constant 0 : i32
    %c0_i32_0 = arith.constant 0 : i32
    %c0_i32_1 = arith.constant 0 : i32
    return %c0_i32, %c0_i32_0 : i32, i32
  }
  func.func @transform_3(%arg0: i32) -> (i32, i32, i32) {
    %c0_i32 = arith.constant 0 : i32
    %c0_i32_0 = arith.constant 0 : i32
    %c0_i32_1 = arith.constant 0 : i32
    return %arg0, %c0_i32, %c0_i32_0 : i32, i32, i32
  }
}

</mosaic_0001>

<llo_original>
// kernel: tpu_custom_call.1
$region0: #{tpu_custom_call.1}
  #allocation0 [shape = 'u32[]', space=smem, size = 0x4, offset = 0x4, fixed_abs, tag = 'smem constant byte address 0x4 - core index']
  #allocation1 [shape = 'u32[72,128]{1,0:T(1,128)}', space=vmem, size = 0x9000, scoped, tag = 'internal scratch']
  #allocation2 [shape = 'f32[224,384]{1,0:T(8,128)}', space=vmem, size = 0x54000, scoped, tag = 'scratch operand']
  #allocation3 [shape = 'f32[144,384]{1,0:T(8,128)}', space=vmem, size = 0x36000, scoped, tag = 'scratch operand']
  %s0 = inlined_call_operand.vmem [shape: f32[2,18,456], index: 0, kind: input, shape index: {}]
  %s1 = inlined_call_operand.vmem [shape: f32[48,224], index: 1, kind: input, shape index: {}]
  %s2 = inlined_call_operand.vmem [shape: f32[16,144], index: 2, kind: input, shape index: {}]
  %s3 = inlined_call_operand.hbm [shape: f32[2,16,384], index: 3, kind: output, shape index: {}]
  %s4 = sld [smem:[#allocation0]]
  $region45: #{tpu_custom_call.1} parent=0
    _
  %s6 = ssub.s32 1, %s4
  %s7 = scalar_select 0, %s6, %s4
  $region1: #{tpu_custom_call.1} parent=0
    #allocation4 [shape = 'u8[49152]{0}', space=vmem, size = 0xc000, scoped, tag = 'output window, operand 0']
    #allocation5 [shape = 's32[2]{0}', space=sflag, size = 0x8, scoped, tag = 'scoped memory for tpu_custom_call.1']
    %8 = vsyncpa [#allocation5], 0
    %s9 = scalar_lea.sflag [#allocation5], 1
    %10 = vsyncpa %s9, 0
    loop: start=0, step=1, limit=4
    $region2: #{tpu_custom_call.1} parent=1 // loop_pre_header
      _
    $region3: #{tpu_custom_call.1} parent=1 // loop_header
      %s12 = sphi 0, %s16
      %p13 = scmp.ge.s32.totalorder %s12, 4
      %s22 = sphi 0, %s24
      %s25 = sphi 0, %s22
      %s26 = sphi 0, %s25
      %s42 = sphi 0, %s26
      %s46 = sphi 0, %s46
      %s48 = sphi 0, %s46
      %s49 = sphi 0, %s48
      %s63 = sphi 0, %s49
      %s67 = sphi 0, %s67
      %s69 = sphi 0, %s67
      %s70 = sphi 0, %s69
      %s84 = sphi 0, %s70
      %s90 = sphi 0, %s92
      %s93 = sphi 0, %s90
      %s94 = sphi 0, %s93
      %s110 = sphi 0, %s94
    $region4: #{tpu_custom_call.1} parent=1 // loop_header_branch
      %15 = sbr.rel (%p13) target = $region8
    $region5: #{tpu_custom_call.1} parent=1 // loop_body
      %s17 = ssub.s32 %s12, 1
      %s18 = ssub.s32 %s12, 2
      %s19 = sadd.s32 %s12, 1
      %s20 = ssub.s32 %s12, %s19
      %p21 = scmp.eq.s32.totalorder %s20, 0
      %s23 = sadd.s32 %s22, 1
      %s24 = scalar_select %p21, %s22, %s23
      %p27 = pneg %p21
      %p28 = scmp.eq.s32.totalorder %s12, 1
      %p29 = por %p27, %p28
      %p30 = scmp.ne.s32.totalorder %s22, %s25
      %p31 = scmp.eq.s32.totalorder %s12, 0
      %p32 = por %p30, %p31
      %p33 = scmp.ne.s32.totalorder %s22, %s25
      %p34 = scmp.eq.s32.totalorder %s17, 1
      %p35 = por %p33, %p34
      %p36 = scmp.ne.s32.totalorder %s25, %s26
      %p37 = scmp.eq.s32.totalorder %s17, 0
      %p38 = por %p36, %p37
      %p39 = scmp.ne.s32.totalorder %s25, %s26
      %p40 = scmp.eq.s32.totalorder %s18, 1
      %p41 = por %p39, %p40
      %p43 = scmp.ne.s32.totalorder %s26, %s42
      %p44 = scmp.eq.s32.totalorder %s18, 0
      %p45 = por %p43, %p44
      %s47 = sadd.s32 %s46, 1
      %p50 = scmp.eq.s32.totalorder %s12, 1
      %p51 = scmp.ne.s32.totalorder %s46, %s48
      %p52 = scmp.eq.s32.totalorder %s12, 0
      %p53 = por %p51, %p52
      %p54 = scmp.ne.s32.totalorder %s46, %s48
      %p55 = scmp.eq.s32.totalorder %s17, 1
      %p56 = por %p54, %p55
      %p57 = scmp.ne.s32.totalorder %s48, %s49
      %p58 = scmp.eq.s32.totalorder %s17, 0
      %p59 = por %p57, %p58
      %p60 = scmp.ne.s32.totalorder %s48, %s49
      %p61 = scmp.eq.s32.totalorder %s18, 1
      %p62 = por %p60, %p61
      %p64 = scmp.ne.s32.totalorder %s49, %s63
      %p65 = scmp.eq.s32.totalorder %s18, 0
      %p66 = por %p64, %p65
      %s68 = sadd.s32 %s67, 1
      %p71 = scmp.eq.s32.totalorder %s12, 1
      %p72 = scmp.ne.s32.totalorder %s67, %s69
      %p73 = scmp.eq.s32.totalorder %s12, 0
      %p74 = por %p72, %p73
      %p75 = scmp.ne.s32.totalorder %s67, %s69
      %p76 = scmp.eq.s32.totalorder %s17, 1
      %p77 = por %p75, %p76
      %p78 = scmp.ne.s32.totalorder %s69, %s70
      %p79 = scmp.eq.s32.totalorder %s17, 0
      %p80 = por %p78, %p79
      %p81 = scmp.ne.s32.totalorder %s69, %s70
      %p82 = scmp.eq.s32.totalorder %s18, 1
      %p83 = por %p81, %p82
      %p85 = scmp.ne.s32.totalorder %s70, %s84
      %p86 = scmp.eq.s32.totalorder %s18, 0
      %p87 = por %p85, %p86
      %s88 = ssub.s32 %s12, %s19
      %p89 = scmp.eq.s32.totalorder %s88, 0
      %s91 = sadd.s32 %s90, 1
      %s92 = scalar_select %p89, %s90, %s91
      %p95 = pneg %p89
      %p96 = scmp.eq.s32.totalorder %s12, 1
      %p97 = por %p95, %p96
      %p98 = scmp.ne.s32.totalorder %s90, %s93
      %p99 = scmp.eq.s32.totalorder %s12, 0
      %p100 = por %p98, %p99
      %p101 = scmp.ne.s32.totalorder %s90, %s93
      %p102 = scmp.eq.s32.totalorder %s17, 1
      %p103 = por %p101, %p102
      %p104 = scmp.ne.s32.totalorder %s93, %s94
      %p105 = scmp.eq.s32.totalorder %s17, 0
      %p106 = por %p104, %p105
      %p107 = scmp.ne.s32.totalorder %s93, %s94
      %p108 = scmp.eq.s32.totalorder %s18, 1
      %p109 = por %p107, %p108
      %p111 = scmp.ne.s32.totalorder %s94, %s110
      %p112 = scmp.eq.s32.totalorder %s18, 0
      %p113 = por %p111, %p112
      %p114 = scmp.le.s32.totalorder 1, %s12
      %p115 = scmp.lt.s32.totalorder %s12, 3
      %p116 = pnand %p114, %p115
      %p117 = pneg %p116
      // Predicated region
      $region9: #{tpu_custom_call.1} parent=5 // pred_check
        _
      $region10: #{tpu_custom_call.1} parent=5 // pred_check_branch
        %119 = sbr.rel (%p116) target = $region12
      $region11: #{tpu_custom_call.1} parent=5 // pred_region
        %s120 = ssub.s32 %s12, 1
        // Predicated region
        $region13: #{tpu_custom_call.1} parent=11 // pred_check
          %p121 = pneg %p59
        $region14: #{tpu_custom_call.1} parent=11 // pred_check_branch
          %123 = sbr.rel (%p121) target = $region16
        $region15: #{tpu_custom_call.1} parent=11 // pred_region
          _
        $region16: #{tpu_custom_call.1} parent=11 // pred_fallthru
          _
        // Predicated region
        $region17: #{tpu_custom_call.1} parent=11 // pred_check
          %p124 = pneg %p80
        $region18: #{tpu_custom_call.1} parent=11 // pred_check_branch
          %126 = sbr.rel (%p124) target = $region20
        $region19: #{tpu_custom_call.1} parent=11 // pred_region
          _
        $region20: #{tpu_custom_call.1} parent=11 // pred_fallthru
          _
      $region12: #{tpu_custom_call.1} parent=5 // pred_fallthru
        _
      %p127 = scmp.lt.s32.totalorder %s12, 2
      // Predicated region
      $region21: #{tpu_custom_call.1} parent=5 // pred_check
        %p128 = pneg %p127
      $region22: #{tpu_custom_call.1} parent=5 // pred_check_branch
        %130 = sbr.rel (%p128) target = $region24
      $region23: #{tpu_custom_call.1} parent=5 // pred_region
        // Predicated region
        $region25: #{tpu_custom_call.1} parent=23 // pred_check
          %p131 = pneg %p32
        $region26: #{tpu_custom_call.1} parent=23 // pred_check_branch
          %133 = sbr.rel (%p131) target = $region28
        $region27: #{tpu_custom_call.1} parent=23 // pred_region
          %p134 = scmp.lt.s32.totalorder %s12, 1
          %s135 = scalar_select %p134, %s12, 1
          %s136 = smul.addr %s135, 12
          %s137 = smul.addr %s136, 8
          %s138 = scalar_lea.vmem %s0, %s137
        $region28: #{tpu_custom_call.1} parent=23 // pred_fallthru
          _
      $region24: #{tpu_custom_call.1} parent=5 // pred_fallthru
        _
      %p139 = scmp.le.s32.totalorder 1, %s12
      %p140 = scmp.lt.s32.totalorder %s12, 3
      %p141 = pnand %p139, %p140
      %p142 = pneg %p141
      // Predicated region
      $region29: #{tpu_custom_call.1} parent=5 // pred_check
        _
      $region30: #{tpu_custom_call.1} parent=5 // pred_check_branch
        %144 = sbr.rel (%p141) target = $region32
      $region31: #{tpu_custom_call.1} parent=5 // pred_region
        %s145 = ssub.s32 %s12, 1
        %p146 = scmp.lt.s32.totalorder %s17, 1
        %s147 = scalar_select %p146, %s17, 1
        %s148 = smul.addr %s147, 12
        %s149 = smul.addr %s148, 8
        %s150 = scalar_lea.vmem %s0, %s149
        %p151 = pneg %p38
        %p152 = pneg %p35
        %p153 = pneg %p59
        %p154 = pneg %p56
        %p155 = pneg %p80
        %p156 = pneg %p77
        %p157 = pneg %p106
        %p158 = pneg %p103
        %s159 = sand.u32 %s93, 1
        %s160 = scalar_lea.sflag [#allocation5], %s159
        %s161 = sand.u32 %s93, 1
        %s162 = smul.addr %s161, 48
        %s163 = scalar_lea.vmem [#allocation4], %s162
        %p164 = scmp.lt.s32.totalorder %s17, 1
        %s165 = scalar_select %p164, %s17, 1
        %s166 = smul.addr %s165, 12
        %s167 = smul.addr %s166, 8
        %s168 = scalar_lea.vmem %s0, %s167
        %169 = vst [vmem:[#allocation2] sm:$0xff] 0.0
        %170 = vst [vmem:[#allocation2 + $0x8] sm:$0xff] 0.0
        %171 = vst [vmem:[#allocation2 + $0x10] sm:$0xff] 0.0
        %172 = vst [vmem:[#allocation2 + $0x18] sm:$0xff] 0.0
        %173 = vst [vmem:[#allocation2 + $0x20] sm:$0xff] 0.0
        %174 = vst [vmem:[#allocation2 + $0x28] sm:$0xff] 0.0
        %175 = vst [vmem:[#allocation2 + $0x30] sm:$0xff] 0.0
        %176 = vst [vmem:[#allocation2 + $0x38] sm:$0xff] 0.0
        %177 = vst [vmem:[#allocation2 + $0x40] sm:$0xff] 0.0
        %178 = vst [vmem:[#allocation2 + $0x48] sm:$0xff] 0.0
        %179 = vst [vmem:[#allocation2 + $0x50] sm:$0xff] 0.0
        %180 = vst [vmem:[#allocation2 + $0x58] sm:$0xff] 0.0
        %181 = vst [vmem:[#allocation2 + $0x60] sm:$0xff] 0.0
        %182 = vst [vmem:[#allocation2 + $0x68] sm:$0xff] 0.0
        %183 = vst [vmem:[#allocation2 + $0x70] sm:$0xff] 0.0
        %184 = vst [vmem:[#allocation2 + $0x78] sm:$0xff] 0.0
        %185 = vst [vmem:[#allocation2 + $0x80] sm:$0xff] 0.0
        %186 = vst [vmem:[#allocation2 + $0x88] sm:$0xff] 0.0
        %187 = vst [vmem:[#allocation2 + $0x90] sm:$0xff] 0.0
        %188 = vst [vmem:[#allocation2 + $0x98] sm:$0xff] 0.0
        %189 = vst [vmem:[#allocation2 + $0xa0] sm:$0xff] 0.0
        %190 = vst [vmem:[#allocation2 + $0xa8] sm:$0xff] 0.0
        %191 = vst [vmem:[#allocation2 + $0xb0] sm:$0xff] 0.0
        %192 = vst [vmem:[#allocation2 + $0xb8] sm:$0xff] 0.0
        %193 = vst [vmem:[#allocation2 + $0xc0] sm:$0xff] 0.0
        %194 = vst [vmem:[#allocation2 + $0xc8] sm:$0xff] 0.0
        %195 = vst [vmem:[#allocation2 + $0xd0] sm:$0xff] 0.0
        %196 = vst [vmem:[#allocation2 + $0xd8] sm:$0xff] 0.0
        %197 = vst [vmem:[#allocation2 + $0xe0] sm:$0xff] 0.0
        %198 = vst [vmem:[#allocation2 + $0xe8] sm:$0xff] 0.0
        %199 = vst [vmem:[#allocation2 + $0xf0] sm:$0xff] 0.0
        %200 = vst [vmem:[#allocation2 + $0xf8] sm:$0xff] 0.0
        %201 = vst [vmem:[#allocation2 + $0x100] sm:$0xff] 0.0
        %202 = vst [vmem:[#allocation2 + $0x108] sm:$0xff] 0.0
        %203 = vst [vmem:[#allocation2 + $0x110] sm:$0xff] 0.0
        %204 = vst [vmem:[#allocation2 + $0x118] sm:$0xff] 0.0
        %205 = vst [vmem:[#allocation2 + $0x120] sm:$0xff] 0.0
        %206 = vst [vmem:[#allocation2 + $0x128] sm:$0xff] 0.0
        %207 = vst [vmem:[#allocation2 + $0x130] sm:$0xff] 0.0
        %208 = vst [vmem:[#allocation2 + $0x138] sm:$0xff] 0.0
        %209 = vst [vmem:[#allocation2 + $0x140] sm:$0xff] 0.0
        %210 = vst [vmem:[#allocation2 + $0x148] sm:$0xff] 0.0
        %211 = vst [vmem:[#allocation2 + $0x150] sm:$0xff] 0.0
        %212 = vst [vmem:[#allocation2 + $0x158] sm:$0xff] 0.0
        %213 = vst [vmem:[#allocation2 + $0x160] sm:$0xff] 0.0
        %214 = vst [vmem:[#allocation2 + $0x168] sm:$0xff] 0.0
        %215 = vst [vmem:[#allocation2 + $0x170] sm:$0xff] 0.0
        %216 = vst [vmem:[#allocation2 + $0x178] sm:$0xff] 0.0
        %217 = vst [vmem:[#allocation2 + $0x180] sm:$0xff] 0.0
        %218 = vst [vmem:[#allocation2 + $0x188] sm:$0xff] 0.0
        %219 = vst [vmem:[#allocation2 + $0x190] sm:$0xff] 0.0
        %220 = vst [vmem:[#allocation2 + $0x198] sm:$0xff] 0.0
        %221 = vst [vmem:[#allocation2 + $0x1a0] sm:$0xff] 0.0
        %222 = vst [vmem:[#allocation2 + $0x1a8] sm:$0xff] 0.0
        %223 = vst [vmem:[#allocation2 + $0x1b0] sm:$0xff] 0.0
        %224 = vst [vmem:[#allocation2 + $0x1b8] sm:$0xff] 0.0
        %225 = vst [vmem:[#allocation2 + $0x1c0] sm:$0xff] 0.0
        %226 = vst [vmem:[#allocation2 + $0x1c8] sm:$0xff] 0.0
        %227 = vst [vmem:[#allocation2 + $0x1d0] sm:$0xff] 0.0
        %228 = vst [vmem:[#allocation2 + $0x1d8] sm:$0xff] 0.0
        %229 = vst [vmem:[#allocation2 + $0x1e0] sm:$0xff] 0.0
        %230 = vst [vmem:[#allocation2 + $0x1e8] sm:$0xff] 0.0
        %231 = vst [vmem:[#allocation2 + $0x1f0] sm:$0xff] 0.0
        %232 = vst [vmem:[#allocation2 + $0x1f8] sm:$0xff] 0.0
        %233 = vst [vmem:[#allocation2 + $0x200] sm:$0xff] 0.0
        %234 = vst [vmem:[#allocation2 + $0x208] sm:$0xff] 0.0
        %235 = vst [vmem:[#allocation2 + $0x210] sm:$0xff] 0.0
        %236 = vst [vmem:[#allocation2 + $0x218] sm:$0xff] 0.0
        %237 = vst [vmem:[#allocation2 + $0x220] sm:$0xff] 0.0
        %238 = vst [vmem:[#allocation2 + $0x228] sm:$0xff] 0.0
        %239 = vst [vmem:[#allocation2 + $0x230] sm:$0xff] 0.0
        %240 = vst [vmem:[#allocation2 + $0x238] sm:$0xff] 0.0
        %241 = vst [vmem:[#allocation2 + $0x240] sm:$0xff] 0.0
        %242 = vst [vmem:[#allocation2 + $0x248] sm:$0xff] 0.0
        %243 = vst [vmem:[#allocation2 + $0x250] sm:$0xff] 0.0
        %244 = vst [vmem:[#allocation2 + $0x258] sm:$0xff] 0.0
        %245 = vst [vmem:[#allocation2 + $0x260] sm:$0xff] 0.0
        %246 = vst [vmem:[#allocation2 + $0x268] sm:$0xff] 0.0
        %247 = vst [vmem:[#allocation2 + $0x270] sm:$0xff] 0.0
        %248 = vst [vmem:[#allocation2 + $0x278] sm:$0xff] 0.0
        %249 = vst [vmem:[#allocation2 + $0x280] sm:$0xff] 0.0
        %250 = vst [vmem:[#allocation2 + $0x288] sm:$0xff] 0.0
        %251 = vst [vmem:[#allocation2 + $0x290] sm:$0xff] 0.0
        %252 = vst [vmem:[#allocation2 + $0x298] sm:$0xff] 0.0
        %v253 = vlaneseq
        %vm254 = vcmp.ge.s32.totalorder %v253, 0
        %vm255 = vcmp.lt.s32.totalorder %v253, 384
        %vm256 = vmand %vm254, %vm255
        %s257 = scalar_lea.vmem [#allocation2], 648
        %258 = vst.msk [vmem:[%s257] ss:$8 sm:$0x7] %vm256, 1.0
        %259 = vst.msk [vmem:[%s257] ss:$8 sm:$0x0] %vm256, 1.0
        %v260 = vld [vmem:[%s168] sm:$0xff]
        %v261 = vld [vmem:[%s168 + $0x8] sm:$0xff]
        %v262 = vld [vmem:[%s168 + $0x10] sm:$0xff]
        %v263 = vld [vmem:[%s168 + $0x20] sm:$0xff]
        %v264 = vld [vmem:[%s168 + $0x28] sm:$0xff]
        %v265 = vld [vmem:[%s168 + $0x30] sm:$0xff]
        %v266 = vld [vmem:[%s168 + $0x40] sm:$0x3]
        %v267 = vld [vmem:[%s168 + $0x48] sm:$0x3]
        %v268 = vld [vmem:[%s168 + $0x50] sm:$0x3]
        %269 = vst [vmem:[#allocation2] sm:$0xff] %v260
        %270 = vst [vmem:[#allocation2 + $0x8] sm:$0xff] %v261
        %271 = vst [vmem:[#allocation2 + $0x10] sm:$0xff] %v262
        %272 = vst [vmem:[#allocation2 + $0x18] sm:$0xff] %v263
        %273 = vst [vmem:[#allocation2 + $0x20] sm:$0xff] %v264
        %274 = vst [vmem:[#allocation2 + $0x28] sm:$0xff] %v265
        %275 = vst [vmem:[#allocation2 + $0x30] sm:$0x3] %v266
        %276 = vst [vmem:[#allocation2 + $0x38] sm:$0x3] %v267
        %277 = vst [vmem:[#allocation2 + $0x40] sm:$0x3] %v268
        %v278 = vld [vmem:[%s168] sm:$0xff]
        %v279 = vld [vmem:[%s168 + $0x8] sm:$0xff]
        %v280 = vld [vmem:[%s168 + $0x10] sm:$0xff]
        %v281 = vld [vmem:[%s168 + $0x18] sm:$0xff]
        %v282 = vld [vmem:[%s168 + $0x20] sm:$0xff]
        %v283 = vld [vmem:[%s168 + $0x28] sm:$0xff]
        %v284 = vld [vmem:[%s168 + $0x30] sm:$0xff]
        %v285 = vld [vmem:[%s168 + $0x38] sm:$0xff]
        %v286 = vld [vmem:[%s168 + $0x40] sm:$0x3]
        %v287 = vld [vmem:[%s168 + $0x48] sm:$0x3]
        %v288 = vld [vmem:[%s168 + $0x50] sm:$0x3]
        %v289 = vld [vmem:[%s168 + $0x58] sm:$0x3]
        %302 = vrot.lane.b32.xlu0 %v278, 127
        %v303 = vpop.permute.xlu0 %302
        %304 = vrot.lane.b32.xlu0 %v279, 127
        %v305 = vpop.permute.xlu0 %304
        %306 = vrot.lane.b32.xlu0 %v280, 127
        %v307 = vpop.permute.xlu0 %306
        %308 = vrot.lane.b32.xlu0 %v281, 127
        %v309 = vpop.permute.xlu0 %308
        %310 = vrot.lane.b32.xlu0 %v282, 127
        %v311 = vpop.permute.xlu0 %310
        %312 = vrot.lane.b32.xlu0 %v283, 127
        %v313 = vpop.permute.xlu0 %312
        %314 = vrot.lane.b32.xlu0 %v284, 127
        %v315 = vpop.permute.xlu0 %314
        %316 = vrot.lane.b32.xlu0 %v285, 127
        %v317 = vpop.permute.xlu0 %316
        %318 = vrot.lane.b32.xlu0 %v286, 127
        %v319 = vpop.permute.xlu0 %318
        %320 = vrot.lane.b32.xlu0 %v287, 127
        %v321 = vpop.permute.xlu0 %320
        %322 = vrot.lane.b32.xlu0 %v288, 127
        %v323 = vpop.permute.xlu0 %322
        %324 = vrot.lane.b32.xlu0 %v289, 127
        %v325 = vpop.permute.xlu0 %324
        %vm326 = vcmask 1039360
        %v327 = vsel %vm326, %v303, %v305
        %v328 = vsel %vm326, %v305, %v307
        %v329 = vsel %vm326, %v307, %v309
        %v330 = vsel %vm326, %v311, %v313
        %v331 = vsel %vm326, %v313, %v315
        %v332 = vsel %vm326, %v315, %v317
        %v333 = vsel %vm326, %v319, %v321
        %v334 = vsel %vm326, %v321, %v323
        %v335 = vsel %vm326, %v323, %v325
        %345 = vst [vmem:[#allocation2 + $0x48] sm:$0xff] %v327
        %346 = vst [vmem:[#allocation2 + $0x50] sm:$0xff] %v328
        %347 = vst [vmem:[#allocation2 + $0x58] sm:$0xff] %v329
        %348 = vst [vmem:[#allocation2 + $0x60] sm:$0xff] %v330
        %349 = vst [vmem:[#allocation2 + $0x68] sm:$0xff] %v331
        %350 = vst [vmem:[#allocation2 + $0x70] sm:$0xff] %v332
        %351 = vst [vmem:[#allocation2 + $0x78] sm:$0x3] %v333
        %352 = vst [vmem:[#allocation2 + $0x80] sm:$0x3] %v334
        %353 = vst [vmem:[#allocation2 + $0x88] sm:$0x3] %v335
        %v354 = vld [vmem:[%s168] sm:$0xff]
        %v355 = vld [vmem:[%s168 + $0x8] sm:$0xff]
        %v356 = vld [vmem:[%s168 + $0x10] sm:$0xff]
        %v357 = vld [vmem:[%s168 + $0x18] sm:$0xff]
        %v358 = vld [vmem:[%s168 + $0x20] sm:$0xff]
        %v359 = vld [vmem:[%s168 + $0x28] sm:$0xff]
        %v360 = vld [vmem:[%s168 + $0x30] sm:$0xff]
        %v361 = vld [vmem:[%s168 + $0x38] sm:$0xff]
        %v362 = vld [vmem:[%s168 + $0x40] sm:$0x3]
        %v363 = vld [vmem:[%s168 + $0x48] sm:$0x3]
        %v364 = vld [vmem:[%s168 + $0x50] sm:$0x3]
        %v365 = vld [vmem:[%s168 + $0x58] sm:$0x3]
        %378 = vrot.lane.b32.xlu0 %v354, 126
        %v379 = vpop.permute.xlu0 %378
        %380 = vrot.lane.b32.xlu0 %v355, 126
        %v381 = vpop.permute.xlu0 %380
        %382 = vrot.lane.b32.xlu0 %v356, 126
        %v383 = vpop.permute.xlu0 %382
        %384 = vrot.lane.b32.xlu0 %v357, 126
        %v385 = vpop.permute.xlu0 %384
        %386 = vrot.lane.b32.xlu0 %v358, 126
        %v387 = vpop.permute.xlu0 %386
        %388 = vrot.lane.b32.xlu0 %v359, 126
        %v389 = vpop.permute.xlu0 %388
        %390 = vrot.lane.b32.xlu0 %v360, 126
        %v391 = vpop.permute.xlu0 %390
        %392 = vrot.lane.b32.xlu0 %v361, 126
        %v393 = vpop.permute.xlu0 %392
        %394 = vrot.lane.b32.xlu0 %v362, 126
        %v395 = vpop.permute.xlu0 %394
        %396 = vrot.lane.b32.xlu0 %v363, 126
        %v397 = vpop.permute.xlu0 %396
        %398 = vrot.lane.b32.xlu0 %v364, 126
        %v399 = vpop.permute.xlu0 %398
        %400 = vrot.lane.b32.xlu0 %v365, 126
        %v401 = vpop.permute.xlu0 %400
        %vm402 = vcmask 1031168
        %v403 = vsel %vm402, %v379, %v381
        %v404 = vsel %vm402, %v381, %v383
        %v405 = vsel %vm402, %v383, %v385
        %v406 = vsel %vm402, %v387, %v389
        %v407 = vsel %vm402, %v389, %v391
        %v408 = vsel %vm402, %v391, %v393
        %v409 = vsel %vm402, %v395, %v397
        %v410 = vsel %vm402, %v397, %v399
        %v411 = vsel %vm402, %v399, %v401
        %421 = vst [vmem:[#allocation2 + $0x90] sm:$0xff] %v403
        %422 = vst [vmem:[#allocation2 + $0x98] sm:$0xff] %v404
        %423 = vst [vmem:[#allocation2 + $0xa0] sm:$0xff] %v405
        %424 = vst [vmem:[#allocation2 + $0xa8] sm:$0xff] %v406
        %425 = vst [vmem:[#allocation2 + $0xb0] sm:$0xff] %v407
        %426 = vst [vmem:[#allocation2 + $0xb8] sm:$0xff] %v408
        %427 = vst [vmem:[#allocation2 + $0xc0] sm:$0x3] %v409
        %428 = vst [vmem:[#allocation2 + $0xc8] sm:$0x3] %v410
        %429 = vst [vmem:[#allocation2 + $0xd0] sm:$0x3] %v411
        %v430 = vld [vmem:[%s168] sm:$0xff]
        %v431 = vld [vmem:[%s168 + $0x8] sm:$0xff]
        %v432 = vld [vmem:[%s168 + $0x10] sm:$0xff]
        %v433 = vld [vmem:[%s168 + $0x18] sm:$0xff]
        %v434 = vld [vmem:[%s168 + $0x20] sm:$0xff]
        %v435 = vld [vmem:[%s168 + $0x28] sm:$0xff]
        %v436 = vld [vmem:[%s168 + $0x30] sm:$0xff]
        %v437 = vld [vmem:[%s168 + $0x38] sm:$0xff]
        %v438 = vld [vmem:[%s168 + $0x40] sm:$0x3]
        %v439 = vld [vmem:[%s168 + $0x48] sm:$0x3]
        %v440 = vld [vmem:[%s168 + $0x50] sm:$0x3]
        %v441 = vld [vmem:[%s168 + $0x58] sm:$0x3]
        %454 = vrot.lane.b32.xlu0 %v430, 104
        %v455 = vpop.permute.xlu0 %454
        %456 = vrot.lane.b32.xlu0 %v431, 104
        %v457 = vpop.permute.xlu0 %456
        %458 = vrot.lane.b32.xlu0 %v432, 104
        %v459 = vpop.permute.xlu0 %458
        %460 = vrot.lane.b32.xlu0 %v433, 104
        %v461 = vpop.permute.xlu0 %460
        %462 = vrot.lane.b32.xlu0 %v434, 104
        %v463 = vpop.permute.xlu0 %462
        %464 = vrot.lane.b32.xlu0 %v435, 104
        %v465 = vpop.permute.xlu0 %464
        %466 = vrot.lane.b32.xlu0 %v436, 104
        %v467 = vpop.permute.xlu0 %466
        %468 = vrot.lane.b32.xlu0 %v437, 104
        %v469 = vpop.permute.xlu0 %468
        %470 = vrot.lane.b32.xlu0 %v438, 104
        %v471 = vpop.permute.xlu0 %470
        %472 = vrot.lane.b32.xlu0 %v439, 104
        %v473 = vpop.permute.xlu0 %472
        %474 = vrot.lane.b32.xlu0 %v440, 104
        %v475 = vpop.permute.xlu0 %474
        %476 = vrot.lane.b32.xlu0 %v441, 104
        %v477 = vpop.permute.xlu0 %476
        %vm478 = vcmask 850944
        %v479 = vsel %vm478, %v455, %v457
        %v480 = vsel %vm478, %v457, %v459
        %v481 = vsel %vm478, %v459, %v461
        %v482 = vsel %vm478, %v463, %v465
        %v483 = vsel %vm478, %v465, %v467
        %v484 = vsel %vm478, %v467, %v469
        %v485 = vsel %vm478, %v471, %v473
        %v486 = vsel %vm478, %v473, %v475
        %v487 = vsel %vm478, %v475, %v477
        %497 = vst [vmem:[#allocation2 + $0xd8] sm:$0xff] %v479
        %498 = vst [vmem:[#allocation2 + $0xe0] sm:$0xff] %v480
        %499 = vst [vmem:[#allocation2 + $0xe8] sm:$0xff] %v481
        %500 = vst [vmem:[#allocation2 + $0xf0] sm:$0xff] %v482
        %501 = vst [vmem:[#allocation2 + $0xf8] sm:$0xff] %v483
        %502 = vst [vmem:[#allocation2 + $0x100] sm:$0xff] %v484
        %503 = vst [vmem:[#allocation2 + $0x108] sm:$0x3] %v485
        %504 = vst [vmem:[#allocation2 + $0x110] sm:$0x3] %v486
        %505 = vst [vmem:[#allocation2 + $0x118] sm:$0x3] %v487
        %v506 = vld [vmem:[%s168] sm:$0xff]
        %v507 = vld [vmem:[%s168 + $0x8] sm:$0xff]
        %v508 = vld [vmem:[%s168 + $0x10] sm:$0xff]
        %v509 = vld [vmem:[%s168 + $0x18] sm:$0xff]
        %v510 = vld [vmem:[%s168 + $0x20] sm:$0xff]
        %v511 = vld [vmem:[%s168 + $0x28] sm:$0xff]
        %v512 = vld [vmem:[%s168 + $0x30] sm:$0xff]
        %v513 = vld [vmem:[%s168 + $0x38] sm:$0xff]
        %v514 = vld [vmem:[%s168 + $0x40] sm:$0x3]
        %v515 = vld [vmem:[%s168 + $0x48] sm:$0x3]
        %v516 = vld [vmem:[%s168 + $0x50] sm:$0x3]
        %v517 = vld [vmem:[%s168 + $0x58] sm:$0x3]
        %530 = vrot.lane.b32.xlu0 %v506, 103
        %v531 = vpop.permute.xlu0 %530
        %532 = vrot.lane.b32.xlu0 %v507, 103
        %v533 = vpop.permute.xlu0 %532
        %534 = vrot.lane.b32.xlu0 %v508, 103
        %v535 = vpop.permute.xlu0 %534
        %536 = vrot.lane.b32.xlu0 %v509, 103
        %v537 = vpop.permute.xlu0 %536
        %538 = vrot.lane.b32.xlu0 %v510, 103
        %v539 = vpop.permute.xlu0 %538
        %540 = vrot.lane.b32.xlu0 %v511, 103
        %v541 = vpop.permute.xlu0 %540
        %542 = vrot.lane.b32.xlu0 %v512, 103
        %v543 = vpop.permute.xlu0 %542
        %544 = vrot.lane.b32.xlu0 %v513, 103
        %v545 = vpop.permute.xlu0 %544
        %546 = vrot.lane.b32.xlu0 %v514, 103
        %v547 = vpop.permute.xlu0 %546
        %548 = vrot.lane.b32.xlu0 %v515, 103
        %v549 = vpop.permute.xlu0 %548
        %550 = vrot.lane.b32.xlu0 %v516, 103
        %v551 = vpop.permute.xlu0 %550
        %552 = vrot.lane.b32.xlu0 %v517, 103
        %v553 = vpop.permute.xlu0 %552
        %vm554 = vcmask 842752
        %v555 = vsel %vm554, %v531, %v533
        %v556 = vsel %vm554, %v533, %v535
        %v557 = vsel %vm554, %v535, %v537
        %v558 = vsel %vm554, %v539, %v541
        %v559 = vsel %vm554, %v541, %v543
        %v560 = vsel %vm554, %v543, %v545
        %v561 = vsel %vm554, %v547, %v549
        %v562 = vsel %vm554, %v549, %v551
        %v563 = vsel %vm554, %v551, %v553
        %573 = vst [vmem:[#allocation2 + $0x120] sm:$0xff] %v555
        %574 = vst [vmem:[#allocation2 + $0x128] sm:$0xff] %v556
        %575 = vst [vmem:[#allocation2 + $0x130] sm:$0xff] %v557
        %576 = vst [vmem:[#allocation2 + $0x138] sm:$0xff] %v558
        %577 = vst [vmem:[#allocation2 + $0x140] sm:$0xff] %v559
        %578 = vst [vmem:[#allocation2 + $0x148] sm:$0xff] %v560
        %579 = vst [vmem:[#allocation2 + $0x150] sm:$0x3] %v561
        %580 = vst [vmem:[#allocation2 + $0x158] sm:$0x3] %v562
        %581 = vst [vmem:[#allocation2 + $0x160] sm:$0x3] %v563
        %v582 = vld [vmem:[%s168] sm:$0xff]
        %v583 = vld [vmem:[%s168 + $0x8] sm:$0xff]
        %v584 = vld [vmem:[%s168 + $0x10] sm:$0xff]
        %v585 = vld [vmem:[%s168 + $0x18] sm:$0xff]
        %v586 = vld [vmem:[%s168 + $0x20] sm:$0xff]
        %v587 = vld [vmem:[%s168 + $0x28] sm:$0xff]
        %v588 = vld [vmem:[%s168 + $0x30] sm:$0xff]
        %v589 = vld [vmem:[%s168 + $0x38] sm:$0xff]
        %v590 = vld [vmem:[%s168 + $0x40] sm:$0x3]
        %v591 = vld [vmem:[%s168 + $0x48] sm:$0x3]
        %v592 = vld [vmem:[%s168 + $0x50] sm:$0x3]
        %v593 = vld [vmem:[%s168 + $0x58] sm:$0x3]
        %606 = vrot.lane.b32.xlu0 %v582, 102
        %v607 = vpop.permute.xlu0 %606
        %608 = vrot.lane.b32.xlu0 %v583, 102
        %v609 = vpop.permute.xlu0 %608
        %610 = vrot.lane.b32.xlu0 %v584, 102
        %v611 = vpop.permute.xlu0 %610
        %612 = vrot.lane.b32.xlu0 %v585, 102
        %v613 = vpop.permute.xlu0 %612
        %614 = vrot.lane.b32.xlu0 %v586, 102
        %v615 = vpop.permute.xlu0 %614
        %616 = vrot.lane.b32.xlu0 %v587, 102
        %v617 = vpop.permute.xlu0 %616
        %618 = vrot.lane.b32.xlu0 %v588, 102
        %v619 = vpop.permute.xlu0 %618
        %620 = vrot.lane.b32.xlu0 %v589, 102
        %v621 = vpop.permute.xlu0 %620
        %622 = vrot.lane.b32.xlu0 %v590, 102
        %v623 = vpop.permute.xlu0 %622
        %624 = vrot.lane.b32.xlu0 %v591, 102
        %v625 = vpop.permute.xlu0 %624
        %626 = vrot.lane.b32.xlu0 %v592, 102
        %v627 = vpop.permute.xlu0 %626
        %628 = vrot.lane.b32.xlu0 %v593, 102
        %v629 = vpop.permute.xlu0 %628
        %vm630 = vcmask 834560
        %v631 = vsel %vm630, %v607, %v609
        %v632 = vsel %vm630, %v609, %v611
        %v633 = vsel %vm630, %v611, %v613
        %v634 = vsel %vm630, %v615, %v617
        %v635 = vsel %vm630, %v617, %v619
        %v636 = vsel %vm630, %v619, %v621
        %v637 = vsel %vm630, %v623, %v625
        %v638 = vsel %vm630, %v625, %v627
        %v639 = vsel %vm630, %v627, %v629
        %649 = vst [vmem:[#allocation2 + $0x168] sm:$0xff] %v631
        %650 = vst [vmem:[#allocation2 + $0x170] sm:$0xff] %v632
        %651 = vst [vmem:[#allocation2 + $0x178] sm:$0xff] %v633
        %652 = vst [vmem:[#allocation2 + $0x180] sm:$0xff] %v634
        %653 = vst [vmem:[#allocation2 + $0x188] sm:$0xff] %v635
        %654 = vst [vmem:[#allocation2 + $0x190] sm:$0xff] %v636
        %655 = vst [vmem:[#allocation2 + $0x198] sm:$0x3] %v637
        %656 = vst [vmem:[#allocation2 + $0x1a0] sm:$0x3] %v638
        %657 = vst [vmem:[#allocation2 + $0x1a8] sm:$0x3] %v639
        %v658 = vld [vmem:[%s168] sm:$0xff]
        %v659 = vld [vmem:[%s168 + $0x8] sm:$0xff]
        %v660 = vld [vmem:[%s168 + $0x10] sm:$0xff]
        %v661 = vld [vmem:[%s168 + $0x18] sm:$0xff]
        %v662 = vld [vmem:[%s168 + $0x20] sm:$0xff]
        %v663 = vld [vmem:[%s168 + $0x28] sm:$0xff]
        %v664 = vld [vmem:[%s168 + $0x30] sm:$0xff]
        %v665 = vld [vmem:[%s168 + $0x38] sm:$0xff]
        %v666 = vld [vmem:[%s168 + $0x40] sm:$0x3]
        %v667 = vld [vmem:[%s168 + $0x48] sm:$0x3]
        %v668 = vld [vmem:[%s168 + $0x50] sm:$0x3]
        %v669 = vld [vmem:[%s168 + $0x58] sm:$0x3]
        %682 = vrot.lane.b32.xlu0 %v658, 80
        %v683 = vpop.permute.xlu0 %682
        %684 = vrot.lane.b32.xlu0 %v659, 80
        %v685 = vpop.permute.xlu0 %684
        %686 = vrot.lane.b32.xlu0 %v660, 80
        %v687 = vpop.permute.xlu0 %686
        %688 = vrot.lane.b32.xlu0 %v661, 80
        %v689 = vpop.permute.xlu0 %688
        %690 = vrot.lane.b32.xlu0 %v662, 80
        %v691 = vpop.permute.xlu0 %690
        %692 = vrot.lane.b32.xlu0 %v663, 80
        %v693 = vpop.permute.xlu0 %692
        %694 = vrot.lane.b32.xlu0 %v664, 80
        %v695 = vpop.permute.xlu0 %694
        %696 = vrot.lane.b32.xlu0 %v665, 80
        %v697 = vpop.permute.xlu0 %696
        %698 = vrot.lane.b32.xlu0 %v666, 80
        %v699 = vpop.permute.xlu0 %698
        %700 = vrot.lane.b32.xlu0 %v667, 80
        %v701 = vpop.permute.xlu0 %700
        %702 = vrot.lane.b32.xlu0 %v668, 80
        %v703 = vpop.permute.xlu0 %702
        %704 = vrot.lane.b32.xlu0 %v669, 80
        %v705 = vpop.permute.xlu0 %704
        %vm706 = vcmask 654336
        %v707 = vsel %vm706, %v683, %v685
        %v708 = vsel %vm706, %v685, %v687
        %v709 = vsel %vm706, %v687, %v689
        %v710 = vsel %vm706, %v691, %v693
        %v711 = vsel %vm706, %v693, %v695
        %v712 = vsel %vm706, %v695, %v697
        %v713 = vsel %vm706, %v699, %v701
        %v714 = vsel %vm706, %v701, %v703
        %v715 = vsel %vm706, %v703, %v705
        %725 = vst [vmem:[#allocation2 + $0x1b0] sm:$0xff] %v707
        %726 = vst [vmem:[#allocation2 + $0x1b8] sm:$0xff] %v708
        %727 = vst [vmem:[#allocation2 + $0x1c0] sm:$0xff] %v709
        %728 = vst [vmem:[#allocation2 + $0x1c8] sm:$0xff] %v710
        %729 = vst [vmem:[#allocation2 + $0x1d0] sm:$0xff] %v711
        %730 = vst [vmem:[#allocation2 + $0x1d8] sm:$0xff] %v712
        %731 = vst [vmem:[#allocation2 + $0x1e0] sm:$0x3] %v713
        %732 = vst [vmem:[#allocation2 + $0x1e8] sm:$0x3] %v714
        %733 = vst [vmem:[#allocation2 + $0x1f0] sm:$0x3] %v715
        %v734 = vld [vmem:[%s168] sm:$0xff]
        %v735 = vld [vmem:[%s168 + $0x8] sm:$0xff]
        %v736 = vld [vmem:[%s168 + $0x10] sm:$0xff]
        %v737 = vld [vmem:[%s168 + $0x18] sm:$0xff]
        %v738 = vld [vmem:[%s168 + $0x20] sm:$0xff]
        %v739 = vld [vmem:[%s168 + $0x28] sm:$0xff]
        %v740 = vld [vmem:[%s168 + $0x30] sm:$0xff]
        %v741 = vld [vmem:[%s168 + $0x38] sm:$0xff]
        %v742 = vld [vmem:[%s168 + $0x40] sm:$0x3]
        %v743 = vld [vmem:[%s168 + $0x48] sm:$0x3]
        %v744 = vld [vmem:[%s168 + $0x50] sm:$0x3]
        %v745 = vld [vmem:[%s168 + $0x58] sm:$0x3]
        %758 = vrot.lane.b32.xlu0 %v734, 79
        %v759 = vpop.permute.xlu0 %758
        %760 = vrot.lane.b32.xlu0 %v735, 79
        %v761 = vpop.permute.xlu0 %760
        %762 = vrot.lane.b32.xlu0 %v736, 79
        %v763 = vpop.permute.xlu0 %762
        %764 = vrot.lane.b32.xlu0 %v737, 79
        %v765 = vpop.permute.xlu0 %764
        %766 = vrot.lane.b32.xlu0 %v738, 79
        %v767 = vpop.permute.xlu0 %766
        %768 = vrot.lane.b32.xlu0 %v739, 79
        %v769 = vpop.permute.xlu0 %768
        %770 = vrot.lane.b32.xlu0 %v740, 79
        %v771 = vpop.permute.xlu0 %770
        %772 = vrot.lane.b32.xlu0 %v741, 79
        %v773 = vpop.permute.xlu0 %772
        %774 = vrot.lane.b32.xlu0 %v742, 79
        %v775 = vpop.permute.xlu0 %774
        %776 = vrot.lane.b32.xlu0 %v743, 79
        %v777 = vpop.permute.xlu0 %776
        %778 = vrot.lane.b32.xlu0 %v744, 79
        %v779 = vpop.permute.xlu0 %778
        %780 = vrot.lane.b32.xlu0 %v745, 79
        %v781 = vpop.permute.xlu0 %780
        %vm782 = vcmask 646144
        %v783 = vsel %vm782, %v759, %v761
        %v784 = vsel %vm782, %v761, %v763
        %v785 = vsel %vm782, %v763, %v765
        %v786 = vsel %vm782, %v767, %v769
        %v787 = vsel %vm782, %v769, %v771
        %v788 = vsel %vm782, %v771, %v773
        %v789 = vsel %vm782, %v775, %v777
        %v790 = vsel %vm782, %v777, %v779
        %v791 = vsel %vm782, %v779, %v781
        %801 = vst [vmem:[#allocation2 + $0x1f8] sm:$0xff] %v783
        %802 = vst [vmem:[#allocation2 + $0x200] sm:$0xff] %v784
        %803 = vst [vmem:[#allocation2 + $0x208] sm:$0xff] %v785
        %804 = vst [vmem:[#allocation2 + $0x210] sm:$0xff] %v786
        %805 = vst [vmem:[#allocation2 + $0x218] sm:$0xff] %v787
        %806 = vst [vmem:[#allocation2 + $0x220] sm:$0xff] %v788
        %807 = vst [vmem:[#allocation2 + $0x228] sm:$0x3] %v789
        %808 = vst [vmem:[#allocation2 + $0x230] sm:$0x3] %v790
        %809 = vst [vmem:[#allocation2 + $0x238] sm:$0x3] %v791
        %v810 = vld [vmem:[%s168] sm:$0xff]
        %v811 = vld [vmem:[%s168 + $0x8] sm:$0xff]
        %v812 = vld [vmem:[%s168 + $0x10] sm:$0xff]
        %v813 = vld [vmem:[%s168 + $0x18] sm:$0xff]
        %v814 = vld [vmem:[%s168 + $0x20] sm:$0xff]
        %v815 = vld [vmem:[%s168 + $0x28] sm:$0xff]
        %v816 = vld [vmem:[%s168 + $0x30] sm:$0xff]
        %v817 = vld [vmem:[%s168 + $0x38] sm:$0xff]
        %v818 = vld [vmem:[%s168 + $0x40] sm:$0x3]
        %v819 = vld [vmem:[%s168 + $0x48] sm:$0x3]
        %v820 = vld [vmem:[%s168 + $0x50] sm:$0x3]
        %v821 = vld [vmem:[%s168 + $0x58] sm:$0x3]
        %834 = vrot.lane.b32.xlu0 %v810, 78
        %v835 = vpop.permute.xlu0 %834
        %836 = vrot.lane.b32.xlu0 %v811, 78
        %v837 = vpop.permute.xlu0 %836
        %838 = vrot.lane.b32.xlu0 %v812, 78
        %v839 = vpop.permute.xlu0 %838
        %840 = vrot.lane.b32.xlu0 %v813, 78
        %v841 = vpop.permute.xlu0 %840
        %842 = vrot.lane.b32.xlu0 %v814, 78
        %v843 = vpop.permute.xlu0 %842
        %844 = vrot.lane.b32.xlu0 %v815, 78
        %v845 = vpop.permute.xlu0 %844
        %846 = vrot.lane.b32.xlu0 %v816, 78
        %v847 = vpop.permute.xlu0 %846
        %848 = vrot.lane.b32.xlu0 %v817, 78
        %v849 = vpop.permute.xlu0 %848
        %850 = vrot.lane.b32.xlu0 %v818, 78
        %v851 = vpop.permute.xlu0 %850
        %852 = vrot.lane.b32.xlu0 %v819, 78
        %v853 = vpop.permute.xlu0 %852
        %854 = vrot.lane.b32.xlu0 %v820, 78
        %v855 = vpop.permute.xlu0 %854
        %856 = vrot.lane.b32.xlu0 %v821, 78
        %v857 = vpop.permute.xlu0 %856
        %vm858 = vcmask 637952
        %v859 = vsel %vm858, %v835, %v837
        %v860 = vsel %vm858, %v837, %v839
        %v861 = vsel %vm858, %v839, %v841
        %v862 = vsel %vm858, %v843, %v845
        %v863 = vsel %vm858, %v845, %v847
        %v864 = vsel %vm858, %v847, %v849
        %v865 = vsel %vm858, %v851, %v853
        %v866 = vsel %vm858, %v853, %v855
        %v867 = vsel %vm858, %v855, %v857
        %877 = vst [vmem:[#allocation2 + $0x240] sm:$0xff] %v859
        %878 = vst [vmem:[#allocation2 + $0x248] sm:$0xff] %v860
        %879 = vst [vmem:[#allocation2 + $0x250] sm:$0xff] %v861
        %880 = vst [vmem:[#allocation2 + $0x258] sm:$0xff] %v862
        %881 = vst [vmem:[#allocation2 + $0x260] sm:$0xff] %v863
        %882 = vst [vmem:[#allocation2 + $0x268] sm:$0xff] %v864
        %883 = vst [vmem:[#allocation2 + $0x270] sm:$0x3] %v865
        %884 = vst [vmem:[#allocation2 + $0x278] sm:$0x3] %v866
        %885 = vst [vmem:[#allocation2 + $0x280] sm:$0x3] %v867
        %v886 = vld [vmem:[%s1] sm:$0xff]
        %v887 = vld [vmem:[%s1 + $0x8] sm:$0xff]
        %v888 = vld [vmem:[%s1 + $0x10] sm:$0xff]
        %v889 = vld [vmem:[%s1 + $0x18] sm:$0xff]
        %v890 = vld [vmem:[%s1 + $0x20] sm:$0xff]
        %v891 = vld [vmem:[%s1 + $0x28] sm:$0xff]
        %v892 = vld [vmem:[%s1 + $0x30] sm:$0xff]
        %v893 = vld [vmem:[%s1 + $0x38] sm:$0xff]
        %v894 = vld [vmem:[%s1 + $0x40] sm:$0xff]
        %v895 = vld [vmem:[%s1 + $0x48] sm:$0xff]
        %v896 = vld [vmem:[%s1 + $0x50] sm:$0xff]
        %v897 = vld [vmem:[%s1 + $0x58] sm:$0xff]
        %v898 = vld [vmem:[#allocation2] sm:$0xff]
        %v899 = vld [vmem:[#allocation2 + $0x8] sm:$0xff]
        %v900 = vld [vmem:[#allocation2 + $0x10] sm:$0xff]
        %v901 = vld [vmem:[#allocation2 + $0x18] sm:$0xff]
        %v902 = vld [vmem:[#allocation2 + $0x20] sm:$0xff]
        %v903 = vld [vmem:[#allocation2 + $0x28] sm:$0xff]
        %v904 = vld [vmem:[#allocation2 + $0x30] sm:$0xff]
        %v905 = vld [vmem:[#allocation2 + $0x38] sm:$0xff]
        %v906 = vld [vmem:[#allocation2 + $0x40] sm:$0xff]
        %v907 = vld [vmem:[#allocation2 + $0x48] sm:$0xff]
        %v908 = vld [vmem:[#allocation2 + $0x50] sm:$0xff]
        %v909 = vld [vmem:[#allocation2 + $0x58] sm:$0xff]
        %v910 = vld [vmem:[#allocation2 + $0x60] sm:$0xff]
        %v911 = vld [vmem:[#allocation2 + $0x68] sm:$0xff]
        %v912 = vld [vmem:[#allocation2 + $0x70] sm:$0xff]
        %v913 = vld [vmem:[#allocation2 + $0x78] sm:$0xff]
        %v914 = vld [vmem:[#allocation2 + $0x80] sm:$0xff]
        %v915 = vld [vmem:[#allocation2 + $0x88] sm:$0xff]
        %v916 = vld [vmem:[#allocation2 + $0x90] sm:$0xff]
        %v917 = vld [vmem:[#allocation2 + $0x98] sm:$0xff]
        %v918 = vld [vmem:[#allocation2 + $0xa0] sm:$0xff]
        %v919 = vld [vmem:[#allocation2 + $0xa8] sm:$0xff]
        %v920 = vld [vmem:[#allocation2 + $0xb0] sm:$0xff]
        %v921 = vld [vmem:[#allocation2 + $0xb8] sm:$0xff]
        %v922 = vld [vmem:[#allocation2 + $0xc0] sm:$0xff]
        %v923 = vld [vmem:[#allocation2 + $0xc8] sm:$0xff]
        %v924 = vld [vmem:[#allocation2 + $0xd0] sm:$0xff]
        %v925 = vld [vmem:[#allocation2 + $0xd8] sm:$0xff]
        %v926 = vld [vmem:[#allocation2 + $0xe0] sm:$0xff]
        %v927 = vld [vmem:[#allocation2 + $0xe8] sm:$0xff]
        %v928 = vld [vmem:[#allocation2 + $0xf0] sm:$0xff]
        %v929 = vld [vmem:[#allocation2 + $0xf8] sm:$0xff]
        %v930 = vld [vmem:[#allocation2 + $0x100] sm:$0xff]
        %v931 = vld [vmem:[#allocation2 + $0x108] sm:$0xff]
        %v932 = vld [vmem:[#allocation2 + $0x110] sm:$0xff]
        %v933 = vld [vmem:[#allocation2 + $0x118] sm:$0xff]
        %v934 = vld [vmem:[#allocation2 + $0x120] sm:$0xff]
        %v935 = vld [vmem:[#allocation2 + $0x128] sm:$0xff]
        %v936 = vld [vmem:[#allocation2 + $0x130] sm:$0xff]
        %v937 = vld [vmem:[#allocation2 + $0x138] sm:$0xff]
        %v938 = vld [vmem:[#allocation2 + $0x140] sm:$0xff]
        %v939 = vld [vmem:[#allocation2 + $0x148] sm:$0xff]
        %v940 = vld [vmem:[#allocation2 + $0x150] sm:$0xff]
        %v941 = vld [vmem:[#allocation2 + $0x158] sm:$0xff]
        %v942 = vld [vmem:[#allocation2 + $0x160] sm:$0xff]
        %v943 = vld [vmem:[#allocation2 + $0x168] sm:$0xff]
        %v944 = vld [vmem:[#allocation2 + $0x170] sm:$0xff]
        %v945 = vld [vmem:[#allocation2 + $0x178] sm:$0xff]
        %v946 = vld [vmem:[#allocation2 + $0x180] sm:$0xff]
        %v947 = vld [vmem:[#allocation2 + $0x188] sm:$0xff]
        %v948 = vld [vmem:[#allocation2 + $0x190] sm:$0xff]
        %v949 = vld [vmem:[#allocation2 + $0x198] sm:$0xff]
        %v950 = vld [vmem:[#allocation2 + $0x1a0] sm:$0xff]
        %v951 = vld [vmem:[#allocation2 + $0x1a8] sm:$0xff]
        %v952 = vld [vmem:[#allocation2 + $0x1b0] sm:$0xff]
        %v953 = vld [vmem:[#allocation2 + $0x1b8] sm:$0xff]
        %v954 = vld [vmem:[#allocation2 + $0x1c0] sm:$0xff]
        %v955 = vld [vmem:[#allocation2 + $0x1c8] sm:$0xff]
        %v956 = vld [vmem:[#allocation2 + $0x1d0] sm:$0xff]
        %v957 = vld [vmem:[#allocation2 + $0x1d8] sm:$0xff]
        %v958 = vld [vmem:[#allocation2 + $0x1e0] sm:$0xff]
        %v959 = vld [vmem:[#allocation2 + $0x1e8] sm:$0xff]
        %v960 = vld [vmem:[#allocation2 + $0x1f0] sm:$0xff]
        %v961 = vld [vmem:[#allocation2 + $0x1f8] sm:$0xff]
        %v962 = vld [vmem:[#allocation2 + $0x200] sm:$0xff]
        %v963 = vld [vmem:[#allocation2 + $0x208] sm:$0xff]
        %v964 = vld [vmem:[#allocation2 + $0x210] sm:$0xff]
        %v965 = vld [vmem:[#allocation2 + $0x218] sm:$0xff]
        %v966 = vld [vmem:[#allocation2 + $0x220] sm:$0xff]
        %v967 = vld [vmem:[#allocation2 + $0x228] sm:$0xff]
        %v968 = vld [vmem:[#allocation2 + $0x230] sm:$0xff]
        %v969 = vld [vmem:[#allocation2 + $0x238] sm:$0xff]
        %v970 = vld [vmem:[#allocation2 + $0x240] sm:$0xff]
        %v971 = vld [vmem:[#allocation2 + $0x248] sm:$0xff]
        %v972 = vld [vmem:[#allocation2 + $0x250] sm:$0xff]
        %v973 = vld [vmem:[#allocation2 + $0x258] sm:$0xff]
        %v974 = vld [vmem:[#allocation2 + $0x260] sm:$0xff]
        %v975 = vld [vmem:[#allocation2 + $0x268] sm:$0xff]
        %v976 = vld [vmem:[#allocation2 + $0x270] sm:$0xff]
        %v977 = vld [vmem:[#allocation2 + $0x278] sm:$0xff]
        %v978 = vld [vmem:[#allocation2 + $0x280] sm:$0xff]
        %v979 = vld [vmem:[#allocation2 + $0x288] sm:$0xff]
        %v980 = vld [vmem:[#allocation2 + $0x290] sm:$0xff]
        %v981 = vld [vmem:[#allocation2 + $0x298] sm:$0xff]
        %vm982 = vcmask 785408
        %v984 = vsel %vm982, %v887, 0
        %v987 = vsel %vm982, %v889, 0
        %v990 = vsel %vm982, %v891, 0
        %v993 = vsel %vm982, %v893, 0
        %v996 = vsel %vm982, %v895, 0
        %v999 = vsel %vm982, %v897, 0
        %1001 = vmatpush.msra.mxu0 %v943
        %1002 = vmatpush.msra.mxu0 %v940
        %1003 = vmatpush.msra.mxu0 %v937
        %1004 = vmatpush.msra.mxu0 %v934
        %1005 = vmatpush.msra.mxu0 %v931
        %1006 = vmatpush.msra.mxu0 %v928
        %1007 = vmatpush.msra.mxu0 %v925
        %1008 = vmatpush.msra.mxu0 %v922
        %1009 = vmatpush.msra.mxu0 %v919
        %1010 = vmatpush.msra.mxu0 %v916
        %1011 = vmatpush.msra.mxu0 %v913
        %1012 = vmatpush.msra.mxu0 %v910
        %1013 = vmatpush.msra.mxu0 %v907
        %1014 = vmatpush.msra.mxu0 %v904
        %1015 = vmatpush.msra.mxu0 %v901
        %1016 = vmatpush.msra.mxu0 %v898
        %1017 = vmatmul.f32.gmra.mxu0 %v886
        %v1018 = vpop.f32.mrf.mxu0
        %v1019 = vadd.f32 0.0, %v1018
        %1020 = vmatmul.f32.gmra.mxu0 %v888
        %v1021 = vpop.f32.mrf.mxu0
        %v1022 = vadd.f32 0.0, %v1021
        %1023 = vmatmul.f32.gmra.mxu0 %v890
        %v1024 = vpop.f32.mrf.mxu0
        %v1025 = vadd.f32 0.0, %v1024
        %1026 = vmatmul.f32.gmra.mxu0 %v892
        %v1027 = vpop.f32.mrf.mxu0
        %v1028 = vadd.f32 0.0, %v1027
        %1029 = vmatmul.f32.gmra.mxu0 %v894
        %v1030 = vpop.f32.mrf.mxu0
        %v1031 = vadd.f32 0.0, %v1030
        %1032 = vmatmul.f32.gmra.mxu0 %v896
        %v1033 = vpop.f32.mrf.mxu0
        %v1034 = vadd.f32 0.0, %v1033
        %1035 = vdwg.mxu0
        %1036 = vmatpush.msra.mxu0 0.0
        %1037 = vmatpush.msra.mxu0 0.0
        %1038 = vmatpush.msra.mxu0 0.0
        %1039 = vmatpush.msra.mxu0 0.0
        %1040 = vmatpush.msra.mxu0 %v979
        %1041 = vmatpush.msra.mxu0 %v976
        %1042 = vmatpush.msra.mxu0 %v973
        %1043 = vmatpush.msra.mxu0 %v970
        %1044 = vmatpush.msra.mxu0 %v967
        %1045 = vmatpush.msra.mxu0 %v964
        %1046 = vmatpush.msra.mxu0 %v961
        %1047 = vmatpush.msra.mxu0 %v958
        %1048 = vmatpush.msra.mxu0 %v955
        %1049 = vmatpush.msra.mxu0 %v952
        %1050 = vmatpush.msra.mxu0 %v949
        %1051 = vmatpush.msra.mxu0 %v946
        %1052 = vmatmul.f32.gmra.mxu0 %v984
        %v1053 = vpop.f32.mrf.mxu0
        %v1054 = vadd.f32 %v1019, %v1053
        %1055 = vmatmul.f32.gmra.mxu0 %v987
        %v1056 = vpop.f32.mrf.mxu0
        %v1057 = vadd.f32 %v1022, %v1056
        %1058 = vmatmul.f32.gmra.mxu0 %v990
        %v1059 = vpop.f32.mrf.mxu0
        %v1060 = vadd.f32 %v1025, %v1059
        %1061 = vmatmul.f32.gmra.mxu0 %v993
        %v1062 = vpop.f32.mrf.mxu0
        %v1063 = vadd.f32 %v1028, %v1062
        %1064 = vmatmul.f32.gmra.mxu0 %v996
        %v1065 = vpop.f32.mrf.mxu0
        %v1066 = vadd.f32 %v1031, %v1065
        %1067 = vmatmul.f32.gmra.mxu0 %v999
        %v1068 = vpop.f32.mrf.mxu0
        %v1069 = vadd.f32 %v1034, %v1068
        %1070 = vdwg.mxu0
        %1071 = vmatpush.msra.mxu0 %v944
        %1072 = vmatpush.msra.mxu0 %v941
        %1073 = vmatpush.msra.mxu0 %v938
        %1074 = vmatpush.msra.mxu0 %v935
        %1075 = vmatpush.msra.mxu0 %v932
        %1076 = vmatpush.msra.mxu0 %v929
        %1077 = vmatpush.msra.mxu0 %v926
        %1078 = vmatpush.msra.mxu0 %v923
        %1079 = vmatpush.msra.mxu0 %v920
        %1080 = vmatpush.msra.mxu0 %v917
        %1081 = vmatpush.msra.mxu0 %v914
        %1082 = vmatpush.msra.mxu0 %v911
        %1083 = vmatpush.msra.mxu0 %v908
        %1084 = vmatpush.msra.mxu0 %v905
        %1085 = vmatpush.msra.mxu0 %v902
        %1086 = vmatpush.msra.mxu0 %v899
        %1087 = vmatmul.f32.gmra.mxu0 %v886
        %v1088 = vpop.f32.mrf.mxu0
        %v1089 = vadd.f32 0.0, %v1088
        %1090 = vmatmul.f32.gmra.mxu0 %v888
        %v1091 = vpop.f32.mrf.mxu0
        %v1092 = vadd.f32 0.0, %v1091
        %1093 = vmatmul.f32.gmra.mxu0 %v890
        %v1094 = vpop.f32.mrf.mxu0
        %v1095 = vadd.f32 0.0, %v1094
        %1096 = vmatmul.f32.gmra.mxu0 %v892
        %v1097 = vpop.f32.mrf.mxu0
        %v1098 = vadd.f32 0.0, %v1097
        %1099 = vmatmul.f32.gmra.mxu0 %v894
        %v1100 = vpop.f32.mrf.mxu0
        %v1101 = vadd.f32 0.0, %v1100
        %1102 = vmatmul.f32.gmra.mxu0 %v896
        %v1103 = vpop.f32.mrf.mxu0
        %v1104 = vadd.f32 0.0, %v1103
        %1105 = vdwg.mxu0
        %1106 = vmatpush.msra.mxu0 0.0
        %1107 = vmatpush.msra.mxu0 0.0
        %1108 = vmatpush.msra.mxu0 0.0
        %1109 = vmatpush.msra.mxu0 0.0
        %1110 = vmatpush.msra.mxu0 %v980
        %1111 = vmatpush.msra.mxu0 %v977
        %1112 = vmatpush.msra.mxu0 %v974
        %1113 = vmatpush.msra.mxu0 %v971
        %1114 = vmatpush.msra.mxu0 %v968
        %1115 = vmatpush.msra.mxu0 %v965
        %1116 = vmatpush.msra.mxu0 %v962
        %1117 = vmatpush.msra.mxu0 %v959
        %1118 = vmatpush.msra.mxu0 %v956
        %1119 = vmatpush.msra.mxu0 %v953
        %1120 = vmatpush.msra.mxu0 %v950
        %1121 = vmatpush.msra.mxu0 %v947
        %1122 = vmatmul.f32.gmra.mxu0 %v984
        %v1123 = vpop.f32.mrf.mxu0
        %v1124 = vadd.f32 %v1089, %v1123
        %1125 = vmatmul.f32.gmra.mxu0 %v987
        %v1126 = vpop.f32.mrf.mxu0
        %v1127 = vadd.f32 %v1092, %v1126
        %1128 = vmatmul.f32.gmra.mxu0 %v990
        %v1129 = vpop.f32.mrf.mxu0
        %v1130 = vadd.f32 %v1095, %v1129
        %1131 = vmatmul.f32.gmra.mxu0 %v993
        %v1132 = vpop.f32.mrf.mxu0
        %v1133 = vadd.f32 %v1098, %v1132
        %1134 = vmatmul.f32.gmra.mxu0 %v996
        %v1135 = vpop.f32.mrf.mxu0
        %v1136 = vadd.f32 %v1101, %v1135
        %1137 = vmatmul.f32.gmra.mxu0 %v999
        %v1138 = vpop.f32.mrf.mxu0
        %v1139 = vadd.f32 %v1104, %v1138
        %1140 = vdwg.mxu0
        %1141 = vmatpush.msra.mxu0 %v945
        %1142 = vmatpush.msra.mxu0 %v942
        %1143 = vmatpush.msra.mxu0 %v939
        %1144 = vmatpush.msra.mxu0 %v936
        %1145 = vmatpush.msra.mxu0 %v933
        %1146 = vmatpush.msra.mxu0 %v930
        %1147 = vmatpush.msra.mxu0 %v927
        %1148 = vmatpush.msra.mxu0 %v924
        %1149 = vmatpush.msra.mxu0 %v921
        %1150 = vmatpush.msra.mxu0 %v918
        %1151 = vmatpush.msra.mxu0 %v915
        %1152 = vmatpush.msra.mxu0 %v912
        %1153 = vmatpush.msra.mxu0 %v909
        %1154 = vmatpush.msra.mxu0 %v906
        %1155 = vmatpush.msra.mxu0 %v903
        %1156 = vmatpush.msra.mxu0 %v900
        %1157 = vmatmul.f32.gmra.mxu0 %v886
        %v1158 = vpop.f32.mrf.mxu0
        %v1159 = vadd.f32 0.0, %v1158
        %1160 = vmatmul.f32.gmra.mxu0 %v888
        %v1161 = vpop.f32.mrf.mxu0
        %v1162 = vadd.f32 0.0, %v1161
        %1163 = vmatmul.f32.gmra.mxu0 %v890
        %v1164 = vpop.f32.mrf.mxu0
        %v1165 = vadd.f32 0.0, %v1164
        %1166 = vmatmul.f32.gmra.mxu0 %v892
        %v1167 = vpop.f32.mrf.mxu0
        %v1168 = vadd.f32 0.0, %v1167
        %1169 = vmatmul.f32.gmra.mxu0 %v894
        %v1170 = vpop.f32.mrf.mxu0
        %v1171 = vadd.f32 0.0, %v1170
        %1172 = vmatmul.f32.gmra.mxu0 %v896
        %v1173 = vpop.f32.mrf.mxu0
        %v1174 = vadd.f32 0.0, %v1173
        %1175 = vdwg.mxu0
        %1176 = vmatpush.msra.mxu0 0.0
        %1177 = vmatpush.msra.mxu0 0.0
        %1178 = vmatpush.msra.mxu0 0.0
        %1179 = vmatpush.msra.mxu0 0.0
        %1180 = vmatpush.msra.mxu0 %v981
        %1181 = vmatpush.msra.mxu0 %v978
        %1182 = vmatpush.msra.mxu0 %v975
        %1183 = vmatpush.msra.mxu0 %v972
        %1184 = vmatpush.msra.mxu0 %v969
        %1185 = vmatpush.msra.mxu0 %v966
        %1186 = vmatpush.msra.mxu0 %v963
        %1187 = vmatpush.msra.mxu0 %v960
        %1188 = vmatpush.msra.mxu0 %v957
        %1189 = vmatpush.msra.mxu0 %v954
        %1190 = vmatpush.msra.mxu0 %v951
        %1191 = vmatpush.msra.mxu0 %v948
        %1192 = vmatmul.f32.gmra.mxu0 %v984
        %v1193 = vpop.f32.mrf.mxu0
        %v1194 = vadd.f32 %v1159, %v1193
        %1195 = vmatmul.f32.gmra.mxu0 %v987
        %v1196 = vpop.f32.mrf.mxu0
        %v1197 = vadd.f32 %v1162, %v1196
        %1198 = vmatmul.f32.gmra.mxu0 %v990
        %v1199 = vpop.f32.mrf.mxu0
        %v1200 = vadd.f32 %v1165, %v1199
        %1201 = vmatmul.f32.gmra.mxu0 %v993
        %v1202 = vpop.f32.mrf.mxu0
        %v1203 = vadd.f32 %v1168, %v1202
        %1204 = vmatmul.f32.gmra.mxu0 %v996
        %v1205 = vpop.f32.mrf.mxu0
        %v1206 = vadd.f32 %v1171, %v1205
        %1207 = vmatmul.f32.gmra.mxu0 %v999
        %v1208 = vpop.f32.mrf.mxu0
        %v1209 = vadd.f32 %v1174, %v1208
        %1210 = vdwg.mxu0
        %v1211 = vxor.u32 %v1054, 2147483648
        %v1212 = vxor.u32 %v1124, 2147483648
        %v1213 = vxor.u32 %v1194, 2147483648
        %v1214 = vxor.u32 %v1057, 2147483648
        %v1215 = vxor.u32 %v1127, 2147483648
        %v1216 = vxor.u32 %v1197, 2147483648
        %v1217 = vmul.f32 %v1211, 1.442695
        %v1218 = vpow.pop %v1217
        %v1219 = vmul.f32 %v1212, 1.442695
        %v1220 = vpow.pop %v1219
        %v1221 = vmul.f32 %v1213, 1.442695
        %v1222 = vpow.pop %v1221
        %v1223 = vmul.f32 %v1214, 1.442695
        %v1224 = vpow.pop %v1223
        %v1225 = vmul.f32 %v1215, 1.442695
        %v1226 = vpow.pop %v1225
        %v1227 = vmul.f32 %v1216, 1.442695
        %v1228 = vpow.pop %v1227
        %v1229 = vadd.f32 %v1218, 1.0
        %v1230 = vadd.f32 %v1220, 1.0
        %v1231 = vadd.f32 %v1222, 1.0
        %v1232 = vadd.f32 %v1224, 1.0
        %v1233 = vadd.f32 %v1226, 1.0
        %v1234 = vadd.f32 %v1228, 1.0
        %v1235 = vrcp.pop %v1229
        %v1236 = vmul.f32 %v1229, %v1235
        %v1237 = vsub.f32 1.0, %v1236
        %v1238 = vmul.f32 %v1235, %v1237
        %v1239 = vadd.f32 %v1235, %v1238
        %vm1240 = vweird.f32 %v1229
        %vm1241 = vweird.f32 %v1235
        %vm1242 = vmor %vm1240, %vm1241
        %v1243 = vsel %vm1242, %v1235, %v1239
        %v1244 = vand.u32 2147483647, %v1229
        %vm1245 = vcmp.eq.f32.partialorder %v1244, 8.507059e+37
        %v1246 = vand.u32 %v1229, 2147483648
        %v1247 = vor.u32 1.1754944e-38, %v1246
        %v1248 = vsel %vm1245, %v1247, %v1243
        %v1249 = vmul.f32 1.0, %v1248
        %v1250 = vrcp.pop %v1230
        %v1251 = vmul.f32 %v1230, %v1250
        %v1252 = vsub.f32 1.0, %v1251
        %v1253 = vmul.f32 %v1250, %v1252
        %v1254 = vadd.f32 %v1250, %v1253
        %vm1255 = vweird.f32 %v1230
        %vm1256 = vweird.f32 %v1250
        %vm1257 = vmor %vm1255, %vm1256
        %v1258 = vsel %vm1257, %v1250, %v1254
        %v1259 = vand.u32 2147483647, %v1230
        %vm1260 = vcmp.eq.f32.partialorder %v1259, 8.507059e+37
        %v1261 = vand.u32 %v1230, 2147483648
        %v1262 = vor.u32 1.1754944e-38, %v1261
        %v1263 = vsel %vm1260, %v1262, %v1258
        %v1264 = vmul.f32 1.0, %v1263
        %v1265 = vrcp.pop %v1231
        %v1266 = vmul.f32 %v1231, %v1265
        %v1267 = vsub.f32 1.0, %v1266
        %v1268 = vmul.f32 %v1265, %v1267
        %v1269 = vadd.f32 %v1265, %v1268
        %vm1270 = vweird.f32 %v1231
        %vm1271 = vweird.f32 %v1265
        %vm1272 = vmor %vm1270, %vm1271
        %v1273 = vsel %vm1272, %v1265, %v1269
        %v1274 = vand.u32 2147483647, %v1231
        %vm1275 = vcmp.eq.f32.partialorder %v1274, 8.507059e+37
        %v1276 = vand.u32 %v1231, 2147483648
        %v1277 = vor.u32 1.1754944e-38, %v1276
        %v1278 = vsel %vm1275, %v1277, %v1273
        %v1279 = vmul.f32 1.0, %v1278
        %v1280 = vrcp.pop %v1232
        %v1281 = vmul.f32 %v1232, %v1280
        %v1282 = vsub.f32 1.0, %v1281
        %v1283 = vmul.f32 %v1280, %v1282
        %v1284 = vadd.f32 %v1280, %v1283
        %vm1285 = vweird.f32 %v1232
        %vm1286 = vweird.f32 %v1280
        %vm1287 = vmor %vm1285, %vm1286
        %v1288 = vsel %vm1287, %v1280, %v1284
        %v1289 = vand.u32 2147483647, %v1232
        %vm1290 = vcmp.eq.f32.partialorder %v1289, 8.507059e+37
        %v1291 = vand.u32 %v1232, 2147483648
        %v1292 = vor.u32 1.1754944e-38, %v1291
        %v1293 = vsel %vm1290, %v1292, %v1288
        %v1294 = vmul.f32 1.0, %v1293
        %v1295 = vrcp.pop %v1233
        %v1296 = vmul.f32 %v1233, %v1295
        %v1297 = vsub.f32 1.0, %v1296
        %v1298 = vmul.f32 %v1295, %v1297
        %v1299 = vadd.f32 %v1295, %v1298
        %vm1300 = vweird.f32 %v1233
        %vm1301 = vweird.f32 %v1295
        %vm1302 = vmor %vm1300, %vm1301
        %v1303 = vsel %vm1302, %v1295, %v1299
        %v1304 = vand.u32 2147483647, %v1233
        %vm1305 = vcmp.eq.f32.partialorder %v1304, 8.507059e+37
        %v1306 = vand.u32 %v1233, 2147483648
        %v1307 = vor.u32 1.1754944e-38, %v1306
        %v1308 = vsel %vm1305, %v1307, %v1303
        %v1309 = vmul.f32 1.0, %v1308
        %v1310 = vrcp.pop %v1234
        %v1311 = vmul.f32 %v1234, %v1310
        %v1312 = vsub.f32 1.0, %v1311
        %v1313 = vmul.f32 %v1310, %v1312
        %v1314 = vadd.f32 %v1310, %v1313
        %vm1315 = vweird.f32 %v1234
        %vm1316 = vweird.f32 %v1310
        %vm1317 = vmor %vm1315, %vm1316
        %v1318 = vsel %vm1317, %v1310, %v1314
        %v1319 = vand.u32 2147483647, %v1234
        %vm1320 = vcmp.eq.f32.partialorder %v1319, 8.507059e+37
        %v1321 = vand.u32 %v1234, 2147483648
        %v1322 = vor.u32 1.1754944e-38, %v1321
        %v1323 = vsel %vm1320, %v1322, %v1318
        %v1324 = vmul.f32 1.0, %v1323
        %v1325 = vxor.u32 %v1060, 2147483648
        %v1326 = vxor.u32 %v1130, 2147483648
        %v1327 = vxor.u32 %v1200, 2147483648
        %v1328 = vxor.u32 %v1063, 2147483648
        %v1329 = vxor.u32 %v1133, 2147483648
        %v1330 = vxor.u32 %v1203, 2147483648
        %v1331 = vmul.f32 %v1325, 1.442695
        %v1332 = vpow.pop %v1331
        %v1333 = vmul.f32 %v1326, 1.442695
        %v1334 = vpow.pop %v1333
        %v1335 = vmul.f32 %v1327, 1.442695
        %v1336 = vpow.pop %v1335
        %v1337 = vmul.f32 %v1328, 1.442695
        %v1338 = vpow.pop %v1337
        %v1339 = vmul.f32 %v1329, 1.442695
        %v1340 = vpow.pop %v1339
        %v1341 = vmul.f32 %v1330, 1.442695
        %v1342 = vpow.pop %v1341
        %v1343 = vadd.f32 %v1332, 1.0
        %v1344 = vadd.f32 %v1334, 1.0
        %v1345 = vadd.f32 %v1336, 1.0
        %v1346 = vadd.f32 %v1338, 1.0
        %v1347 = vadd.f32 %v1340, 1.0
        %v1348 = vadd.f32 %v1342, 1.0
        %v1349 = vrcp.pop %v1343
        %v1350 = vmul.f32 %v1343, %v1349
        %v1351 = vsub.f32 1.0, %v1350
        %v1352 = vmul.f32 %v1349, %v1351
        %v1353 = vadd.f32 %v1349, %v1352
        %vm1354 = vweird.f32 %v1343
        %vm1355 = vweird.f32 %v1349
        %vm1356 = vmor %vm1354, %vm1355
        %v1357 = vsel %vm1356, %v1349, %v1353
        %v1358 = vand.u32 2147483647, %v1343
        %vm1359 = vcmp.eq.f32.partialorder %v1358, 8.507059e+37
        %v1360 = vand.u32 %v1343, 2147483648
        %v1361 = vor.u32 1.1754944e-38, %v1360
        %v1362 = vsel %vm1359, %v1361, %v1357
        %v1363 = vmul.f32 1.0, %v1362
        %v1364 = vrcp.pop %v1344
        %v1365 = vmul.f32 %v1344, %v1364
        %v1366 = vsub.f32 1.0, %v1365
        %v1367 = vmul.f32 %v1364, %v1366
        %v1368 = vadd.f32 %v1364, %v1367
        %vm1369 = vweird.f32 %v1344
        %vm1370 = vweird.f32 %v1364
        %vm1371 = vmor %vm1369, %vm1370
        %v1372 = vsel %vm1371, %v1364, %v1368
        %v1373 = vand.u32 2147483647, %v1344
        %vm1374 = vcmp.eq.f32.partialorder %v1373, 8.507059e+37
        %v1375 = vand.u32 %v1344, 2147483648
        %v1376 = vor.u32 1.1754944e-38, %v1375
        %v1377 = vsel %vm1374, %v1376, %v1372
        %v1378 = vmul.f32 1.0, %v1377
        %v1379 = vrcp.pop %v1345
        %v1380 = vmul.f32 %v1345, %v1379
        %v1381 = vsub.f32 1.0, %v1380
        %v1382 = vmul.f32 %v1379, %v1381
        %v1383 = vadd.f32 %v1379, %v1382
        %vm1384 = vweird.f32 %v1345
        %vm1385 = vweird.f32 %v1379
        %vm1386 = vmor %vm1384, %vm1385
        %v1387 = vsel %vm1386, %v1379, %v1383
        %v1388 = vand.u32 2147483647, %v1345
        %vm1389 = vcmp.eq.f32.partialorder %v1388, 8.507059e+37
        %v1390 = vand.u32 %v1345, 2147483648
        %v1391 = vor.u32 1.1754944e-38, %v1390
        %v1392 = vsel %vm1389, %v1391, %v1387
        %v1393 = vmul.f32 1.0, %v1392
        %v1394 = vrcp.pop %v1346
        %v1395 = vmul.f32 %v1346, %v1394
        %v1396 = vsub.f32 1.0, %v1395
        %v1397 = vmul.f32 %v1394, %v1396
        %v1398 = vadd.f32 %v1394, %v1397
        %vm1399 = vweird.f32 %v1346
        %vm1400 = vweird.f32 %v1394
        %vm1401 = vmor %vm1399, %vm1400
        %v1402 = vsel %vm1401, %v1394, %v1398
        %v1403 = vand.u32 2147483647, %v1346
        %vm1404 = vcmp.eq.f32.partialorder %v1403, 8.507059e+37
        %v1405 = vand.u32 %v1346, 2147483648
        %v1406 = vor.u32 1.1754944e-38, %v1405
        %v1407 = vsel %vm1404, %v1406, %v1402
        %v1408 = vmul.f32 1.0, %v1407
        %v1409 = vrcp.pop %v1347
        %v1410 = vmul.f32 %v1347, %v1409
        %v1411 = vsub.f32 1.0, %v1410
        %v1412 = vmul.f32 %v1409, %v1411
        %v1413 = vadd.f32 %v1409, %v1412
        %vm1414 = vweird.f32 %v1347
        %vm1415 = vweird.f32 %v1409
        %vm1416 = vmor %vm1414, %vm1415
        %v1417 = vsel %vm1416, %v1409, %v1413
        %v1418 = vand.u32 2147483647, %v1347
        %vm1419 = vcmp.eq.f32.partialorder %v1418, 8.507059e+37
        %v1420 = vand.u32 %v1347, 2147483648
        %v1421 = vor.u32 1.1754944e-38, %v1420
        %v1422 = vsel %vm1419, %v1421, %v1417
        %v1423 = vmul.f32 1.0, %v1422
        %v1424 = vrcp.pop %v1348
        %v1425 = vmul.f32 %v1348, %v1424
        %v1426 = vsub.f32 1.0, %v1425
        %v1427 = vmul.f32 %v1424, %v1426
        %v1428 = vadd.f32 %v1424, %v1427
        %vm1429 = vweird.f32 %v1348
        %vm1430 = vweird.f32 %v1424
        %vm1431 = vmor %vm1429, %vm1430
        %v1432 = vsel %vm1431, %v1424, %v1428
        %v1433 = vand.u32 2147483647, %v1348
        %vm1434 = vcmp.eq.f32.partialorder %v1433, 8.507059e+37
        %v1435 = vand.u32 %v1348, 2147483648
        %v1436 = vor.u32 1.1754944e-38, %v1435
        %v1437 = vsel %vm1434, %v1436, %v1432
        %v1438 = vmul.f32 1.0, %v1437
        %1439 = vrot.lane.b32.xlu0 %v1249, 25
        %v1440 = vpop.permute.xlu0 %1439
        %1441 = vrot.lane.b32.xlu0 %v1294, 25
        %v1442 = vpop.permute.xlu0 %1441
        %1443 = vrot.lane.b32.xlu0 %v1264, 25
        %v1444 = vpop.permute.xlu0 %1443
        %1445 = vrot.lane.b32.xlu0 %v1309, 25
        %v1446 = vpop.permute.xlu0 %1445
        %1447 = vrot.lane.b32.xlu0 %v1279, 25
        %v1448 = vpop.permute.xlu0 %1447
        %1449 = vrot.lane.b32.xlu0 %v1324, 25
        %v1450 = vpop.permute.xlu0 %1449
        %v1451 = vlaneseq
        %v1452 = vand.u32 %v1451, 127
        %vm1453 = vcmp.lt.s32.totalorder %v1452, 25
        %v1454 = vsel %vm1453, %v1444, %v1448
        %v1455 = vsel %vm1453, %v1446, %v1450
        %v1456 = vsel %vm1453, %v1440, %v1444
        %v1457 = vsel %vm1453, %v1442, %v1446
        %v1458 = vsel %vm1453, %v1448, %v1440
        %v1459 = vsel %vm1453, %v1450, %v1442
        %v1460 = vld [vmem:[%s168] sm:$0xfc]
        %v1461 = vld [vmem:[%s168 + $0x8] sm:$0xfc]
        %v1462 = vld [vmem:[%s168 + $0x10] sm:$0xfc]
        %v1463 = vld [vmem:[%s168 + $0x20] sm:$0xff]
        %v1464 = vld [vmem:[%s168 + $0x28] sm:$0xff]
        %v1465 = vld [vmem:[%s168 + $0x30] sm:$0xff]
        %v1466 = vld [vmem:[%s168 + $0x40] sm:$0x3]
        %v1467 = vld [vmem:[%s168 + $0x48] sm:$0x3]
        %v1468 = vld [vmem:[%s168 + $0x50] sm:$0x3]
        %vm1478 = vcmask 1045504
        %v1479 = vrot.slane %v1460, 2
        %v1480 = vrot.slane %v1463, 2
        %v1481 = vsel %vm1478, %v1479, %v1480
        %v1482 = vrot.slane %v1461, 2
        %v1483 = vrot.slane %v1464, 2
        %v1484 = vsel %vm1478, %v1482, %v1483
        %v1485 = vrot.slane %v1462, 2
        %v1486 = vrot.slane %v1465, 2
        %v1487 = vsel %vm1478, %v1485, %v1486
        %v1488 = vrot.slane %v1466, 2
        %v1489 = vsel %vm1478, %v1480, %v1488
        %v1490 = vrot.slane %v1467, 2
        %v1491 = vsel %vm1478, %v1483, %v1490
        %v1492 = vrot.slane %v1468, 2
        %v1493 = vsel %vm1478, %v1486, %v1492
        %v1500 = vmul.f32 %v1458, %v1481
        %v1501 = vmul.f32 %v1456, %v1484
        %v1502 = vmul.f32 %v1454, %v1487
        %v1503 = vmul.f32 %v1459, %v1489
        %v1504 = vmul.f32 %v1457, %v1491
        %v1505 = vmul.f32 %v1455, %v1493
        %1506 = vst [vmem:[#allocation3] sm:$0xff] %v1500
        %1507 = vst [vmem:[#allocation3 + $0x8] sm:$0xff] %v1501
        %1508 = vst [vmem:[#allocation3 + $0x10] sm:$0xff] %v1502
        %1509 = vst [vmem:[#allocation3 + $0x18] sm:$0xff] %v1503
        %1510 = vst [vmem:[#allocation3 + $0x20] sm:$0xff] %v1504
        %1511 = vst [vmem:[#allocation3 + $0x28] sm:$0xff] %v1505
        %1512 = vrot.lane.b32.xlu0 %v1249, 24
        %v1513 = vpop.permute.xlu0 %1512
        %1514 = vrot.lane.b32.xlu0 %v1294, 24
        %v1515 = vpop.permute.xlu0 %1514
        %1516 = vrot.lane.b32.xlu0 %v1264, 24
        %v1517 = vpop.permute.xlu0 %1516
        %1518 = vrot.lane.b32.xlu0 %v1309, 24
        %v1519 = vpop.permute.xlu0 %1518
        %1520 = vrot.lane.b32.xlu0 %v1279, 24
        %v1521 = vpop.permute.xlu0 %1520
        %1522 = vrot.lane.b32.xlu0 %v1324, 24
        %v1523 = vpop.permute.xlu0 %1522
        %vm1524 = vcmp.lt.s32.totalorder %v1452, 24
        %v1525 = vsel %vm1524, %v1517, %v1521
        %v1526 = vsel %vm1524, %v1519, %v1523
        %v1527 = vsel %vm1524, %v1513, %v1517
        %v1528 = vsel %vm1524, %v1515, %v1519
        %v1529 = vsel %vm1524, %v1521, %v1513
        %v1530 = vsel %vm1524, %v1523, %v1515
        %v1531 = vld [vmem:[%s168] sm:$0xfc]
        %v1532 = vld [vmem:[%s168 + $0x8] sm:$0xfc]
        %v1533 = vld [vmem:[%s168 + $0x10] sm:$0xfc]
        %v1534 = vld [vmem:[%s168 + $0x18] sm:$0xfc]
        %v1535 = vld [vmem:[%s168 + $0x20] sm:$0xff]
        %v1536 = vld [vmem:[%s168 + $0x28] sm:$0xff]
        %v1537 = vld [vmem:[%s168 + $0x30] sm:$0xff]
        %v1538 = vld [vmem:[%s168 + $0x38] sm:$0xff]
        %v1539 = vld [vmem:[%s168 + $0x40] sm:$0x3]
        %v1540 = vld [vmem:[%s168 + $0x48] sm:$0x3]
        %v1541 = vld [vmem:[%s168 + $0x50] sm:$0x3]
        %v1542 = vld [vmem:[%s168 + $0x58] sm:$0x3]
        %v1555 = vrot.slane %v1531, 2
        %v1556 = vrot.slane %v1535, 2
        %v1557 = vsel %vm1478, %v1555, %v1556
        %v1558 = vrot.slane %v1532, 2
        %v1559 = vrot.slane %v1536, 2
        %v1560 = vsel %vm1478, %v1558, %v1559
        %v1561 = vrot.slane %v1533, 2
        %v1562 = vrot.slane %v1537, 2
        %v1563 = vsel %vm1478, %v1561, %v1562
        %v1564 = vrot.slane %v1534, 2
        %v1565 = vrot.slane %v1538, 2
        %v1566 = vsel %vm1478, %v1564, %v1565
        %v1567 = vrot.slane %v1539, 2
        %v1568 = vsel %vm1478, %v1556, %v1567
        %v1569 = vrot.slane %v1540, 2
        %v1570 = vsel %vm1478, %v1559, %v1569
        %v1571 = vrot.slane %v1541, 2
        %v1572 = vsel %vm1478, %v1562, %v1571
        %v1573 = vrot.slane %v1542, 2
        %v1574 = vsel %vm1478, %v1565, %v1573
        %1575 = vrot.lane.b32.xlu0 %v1557, 127
        %v1576 = vpop.permute.xlu0 %1575
        %1577 = vrot.lane.b32.xlu0 %v1560, 127
        %v1578 = vpop.permute.xlu0 %1577
        %1579 = vrot.lane.b32.xlu0 %v1563, 127
        %v1580 = vpop.permute.xlu0 %1579
        %1581 = vrot.lane.b32.xlu0 %v1566, 127
        %v1582 = vpop.permute.xlu0 %1581
        %1583 = vrot.lane.b32.xlu0 %v1568, 127
        %v1584 = vpop.permute.xlu0 %1583
        %1585 = vrot.lane.b32.xlu0 %v1570, 127
        %v1586 = vpop.permute.xlu0 %1585
        %1587 = vrot.lane.b32.xlu0 %v1572, 127
        %v1588 = vpop.permute.xlu0 %1587
        %1589 = vrot.lane.b32.xlu0 %v1574, 127
        %v1590 = vpop.permute.xlu0 %1589
        %v1591 = vsel %vm326, %v1576, %v1578
        %v1592 = vsel %vm326, %v1578, %v1580
        %v1593 = vsel %vm326, %v1580, %v1582
        %v1594 = vsel %vm326, %v1584, %v1586
        %v1595 = vsel %vm326, %v1586, %v1588
        %v1596 = vsel %vm326, %v1588, %v1590
        %v1603 = vmul.f32 %v1529, %v1591
        %v1604 = vmul.f32 %v1527, %v1592
        %v1605 = vmul.f32 %v1525, %v1593
        %v1606 = vmul.f32 %v1530, %v1594
        %v1607 = vmul.f32 %v1528, %v1595
        %v1608 = vmul.f32 %v1526, %v1596
        %1609 = vst [vmem:[#allocation3 + $0x30] sm:$0xff] %v1603
        %1610 = vst [vmem:[#allocation3 + $0x38] sm:$0xff] %v1604
        %1611 = vst [vmem:[#allocation3 + $0x40] sm:$0xff] %v1605
        %1612 = vst [vmem:[#allocation3 + $0x48] sm:$0xff] %v1606
        %1613 = vst [vmem:[#allocation3 + $0x50] sm:$0xff] %v1607
        %1614 = vst [vmem:[#allocation3 + $0x58] sm:$0xff] %v1608
        %1615 = vrot.lane.b32.xlu0 %v1249, 23
        %v1616 = vpop.permute.xlu0 %1615
        %1617 = vrot.lane.b32.xlu0 %v1294, 23
        %v1618 = vpop.permute.xlu0 %1617
        %1619 = vrot.lane.b32.xlu0 %v1264, 23
        %v1620 = vpop.permute.xlu0 %1619
        %1621 = vrot.lane.b32.xlu0 %v1309, 23
        %v1622 = vpop.permute.xlu0 %1621
        %1623 = vrot.lane.b32.xlu0 %v1279, 23
        %v1624 = vpop.permute.xlu0 %1623
        %1625 = vrot.lane.b32.xlu0 %v1324, 23
        %v1626 = vpop.permute.xlu0 %1625
        %vm1627 = vcmp.lt.s32.totalorder %v1452, 23
        %v1628 = vsel %vm1627, %v1620, %v1624
        %v1629 = vsel %vm1627, %v1622, %v1626
        %v1630 = vsel %vm1627, %v1616, %v1620
        %v1631 = vsel %vm1627, %v1618, %v1622
        %v1632 = vsel %vm1627, %v1624, %v1616
        %v1633 = vsel %vm1627, %v1626, %v1618
        %v1634 = vld [vmem:[%s168] sm:$0xfc]
        %v1635 = vld [vmem:[%s168 + $0x8] sm:$0xfc]
        %v1636 = vld [vmem:[%s168 + $0x10] sm:$0xfc]
        %v1637 = vld [vmem:[%s168 + $0x18] sm:$0xfc]
        %v1638 = vld [vmem:[%s168 + $0x20] sm:$0xff]
        %v1639 = vld [vmem:[%s168 + $0x28] sm:$0xff]
        %v1640 = vld [vmem:[%s168 + $0x30] sm:$0xff]
        %v1641 = vld [vmem:[%s168 + $0x38] sm:$0xff]
        %v1642 = vld [vmem:[%s168 + $0x40] sm:$0x3]
        %v1643 = vld [vmem:[%s168 + $0x48] sm:$0x3]
        %v1644 = vld [vmem:[%s168 + $0x50] sm:$0x3]
        %v1645 = vld [vmem:[%s168 + $0x58] sm:$0x3]
        %v1658 = vrot.slane %v1634, 2
        %v1659 = vrot.slane %v1638, 2
        %v1660 = vsel %vm1478, %v1658, %v1659
        %v1661 = vrot.slane %v1635, 2
        %v1662 = vrot.slane %v1639, 2
        %v1663 = vsel %vm1478, %v1661, %v1662
        %v1664 = vrot.slane %v1636, 2
        %v1665 = vrot.slane %v1640, 2
        %v1666 = vsel %vm1478, %v1664, %v1665
        %v1667 = vrot.slane %v1637, 2
        %v1668 = vrot.slane %v1641, 2
        %v1669 = vsel %vm1478, %v1667, %v1668
        %v1670 = vrot.slane %v1642, 2
        %v1671 = vsel %vm1478, %v1659, %v1670
        %v1672 = vrot.slane %v1643, 2
        %v1673 = vsel %vm1478, %v1662, %v1672
        %v1674 = vrot.slane %v1644, 2
        %v1675 = vsel %vm1478, %v1665, %v1674
        %v1676 = vrot.slane %v1645, 2
        %v1677 = vsel %vm1478, %v1668, %v1676
        %1678 = vrot.lane.b32.xlu0 %v1660, 126
        %v1679 = vpop.permute.xlu0 %1678
        %1680 = vrot.lane.b32.xlu0 %v1663, 126
        %v1681 = vpop.permute.xlu0 %1680
        %1682 = vrot.lane.b32.xlu0 %v1666, 126
        %v1683 = vpop.permute.xlu0 %1682
        %1684 = vrot.lane.b32.xlu0 %v1669, 126
        %v1685 = vpop.permute.xlu0 %1684
        %1686 = vrot.lane.b32.xlu0 %v1671, 126
        %v1687 = vpop.permute.xlu0 %1686
        %1688 = vrot.lane.b32.xlu0 %v1673, 126
        %v1689 = vpop.permute.xlu0 %1688
        %1690 = vrot.lane.b32.xlu0 %v1675, 126
        %v1691 = vpop.permute.xlu0 %1690
        %1692 = vrot.lane.b32.xlu0 %v1677, 126
        %v1693 = vpop.permute.xlu0 %1692
        %v1694 = vsel %vm402, %v1679, %v1681
        %v1695 = vsel %vm402, %v1681, %v1683
        %v1696 = vsel %vm402, %v1683, %v1685
        %v1697 = vsel %vm402, %v1687, %v1689
        %v1698 = vsel %vm402, %v1689, %v1691
        %v1699 = vsel %vm402, %v1691, %v1693
        %v1706 = vmul.f32 %v1632, %v1694
        %v1707 = vmul.f32 %v1630, %v1695
        %v1708 = vmul.f32 %v1628, %v1696
        %v1709 = vmul.f32 %v1633, %v1697
        %v1710 = vmul.f32 %v1631, %v1698
        %v1711 = vmul.f32 %v1629, %v1699
        %1712 = vst [vmem:[#allocation3 + $0x60] sm:$0xff] %v1706
        %1713 = vst [vmem:[#allocation3 + $0x68] sm:$0xff] %v1707
        %1714 = vst [vmem:[#allocation3 + $0x70] sm:$0xff] %v1708
        %1715 = vst [vmem:[#allocation3 + $0x78] sm:$0xff] %v1709
        %1716 = vst [vmem:[#allocation3 + $0x80] sm:$0xff] %v1710
        %1717 = vst [vmem:[#allocation3 + $0x88] sm:$0xff] %v1711
        %1718 = vrot.lane.b32.xlu0 %v1249, 1
        %v1719 = vpop.permute.xlu0 %1718
        %1720 = vrot.lane.b32.xlu0 %v1294, 1
        %v1721 = vpop.permute.xlu0 %1720
        %1722 = vrot.lane.b32.xlu0 %v1264, 1
        %v1723 = vpop.permute.xlu0 %1722
        %1724 = vrot.lane.b32.xlu0 %v1309, 1
        %v1725 = vpop.permute.xlu0 %1724
        %1726 = vrot.lane.b32.xlu0 %v1279, 1
        %v1727 = vpop.permute.xlu0 %1726
        %1728 = vrot.lane.b32.xlu0 %v1324, 1
        %v1729 = vpop.permute.xlu0 %1728
        %vm1730 = vcmp.lt.s32.totalorder %v1452, 1
        %v1731 = vsel %vm1730, %v1723, %v1727
        %v1732 = vsel %vm1730, %v1725, %v1729
        %v1733 = vsel %vm1730, %v1719, %v1723
        %v1734 = vsel %vm1730, %v1721, %v1725
        %v1735 = vsel %vm1730, %v1727, %v1719
        %v1736 = vsel %vm1730, %v1729, %v1721
        %v1737 = vld [vmem:[%s168] sm:$0xfc]
        %v1738 = vld [vmem:[%s168 + $0x8] sm:$0xfc]
        %v1739 = vld [vmem:[%s168 + $0x10] sm:$0xfc]
        %v1740 = vld [vmem:[%s168 + $0x18] sm:$0xfc]
        %v1741 = vld [vmem:[%s168 + $0x20] sm:$0xff]
        %v1742 = vld [vmem:[%s168 + $0x28] sm:$0xff]
        %v1743 = vld [vmem:[%s168 + $0x30] sm:$0xff]
        %v1744 = vld [vmem:[%s168 + $0x38] sm:$0xff]
        %v1745 = vld [vmem:[%s168 + $0x40] sm:$0x3]
        %v1746 = vld [vmem:[%s168 + $0x48] sm:$0x3]
        %v1747 = vld [vmem:[%s168 + $0x50] sm:$0x3]
        %v1748 = vld [vmem:[%s168 + $0x58] sm:$0x3]
        %v1761 = vrot.slane %v1737, 2
        %v1762 = vrot.slane %v1741, 2
        %v1763 = vsel %vm1478, %v1761, %v1762
        %v1764 = vrot.slane %v1738, 2
        %v1765 = vrot.slane %v1742, 2
        %v1766 = vsel %vm1478, %v1764, %v1765
        %v1767 = vrot.slane %v1739, 2
        %v1768 = vrot.slane %v1743, 2
        %v1769 = vsel %vm1478, %v1767, %v1768
        %v1770 = vrot.slane %v1740, 2
        %v1771 = vrot.slane %v1744, 2
        %v1772 = vsel %vm1478, %v1770, %v1771
        %v1773 = vrot.slane %v1745, 2
        %v1774 = vsel %vm1478, %v1762, %v1773
        %v1775 = vrot.slane %v1746, 2
        %v1776 = vsel %vm1478, %v1765, %v1775
        %v1777 = vrot.slane %v1747, 2
        %v1778 = vsel %vm1478, %v1768, %v1777
        %v1779 = vrot.slane %v1748, 2
        %v1780 = vsel %vm1478, %v1771, %v1779
        %1781 = vrot.lane.b32.xlu0 %v1763, 104
        %v1782 = vpop.permute.xlu0 %1781
        %1783 = vrot.lane.b32.xlu0 %v1766, 104
        %v1784 = vpop.permute.xlu0 %1783
        %1785 = vrot.lane.b32.xlu0 %v1769, 104
        %v1786 = vpop.permute.xlu0 %1785
        %1787 = vrot.lane.b32.xlu0 %v1772, 104
        %v1788 = vpop.permute.xlu0 %1787
        %1789 = vrot.lane.b32.xlu0 %v1774, 104
        %v1790 = vpop.permute.xlu0 %1789
        %1791 = vrot.lane.b32.xlu0 %v1776, 104
        %v1792 = vpop.permute.xlu0 %1791
        %1793 = vrot.lane.b32.xlu0 %v1778, 104
        %v1794 = vpop.permute.xlu0 %1793
        %1795 = vrot.lane.b32.xlu0 %v1780, 104
        %v1796 = vpop.permute.xlu0 %1795
        %v1797 = vsel %vm478, %v1782, %v1784
        %v1798 = vsel %vm478, %v1784, %v1786
        %v1799 = vsel %vm478, %v1786, %v1788
        %v1800 = vsel %vm478, %v1790, %v1792
        %v1801 = vsel %vm478, %v1792, %v1794
        %v1802 = vsel %vm478, %v1794, %v1796
        %v1809 = vmul.f32 %v1735, %v1797
        %v1810 = vmul.f32 %v1733, %v1798
        %v1811 = vmul.f32 %v1731, %v1799
        %v1812 = vmul.f32 %v1736, %v1800
        %v1813 = vmul.f32 %v1734, %v1801
        %v1814 = vmul.f32 %v1732, %v1802
        %1815 = vst [vmem:[#allocation3 + $0x90] sm:$0xff] %v1809
        %1816 = vst [vmem:[#allocation3 + $0x98] sm:$0xff] %v1810
        %1817 = vst [vmem:[#allocation3 + $0xa0] sm:$0xff] %v1811
        %1818 = vst [vmem:[#allocation3 + $0xa8] sm:$0xff] %v1812
        %1819 = vst [vmem:[#allocation3 + $0xb0] sm:$0xff] %v1813
        %1820 = vst [vmem:[#allocation3 + $0xb8] sm:$0xff] %v1814
        %v1821 = vld [vmem:[%s168] sm:$0xfc]
        %v1822 = vld [vmem:[%s168 + $0x8] sm:$0xfc]
        %v1823 = vld [vmem:[%s168 + $0x10] sm:$0xfc]
        %v1824 = vld [vmem:[%s168 + $0x18] sm:$0xfc]
        %v1825 = vld [vmem:[%s168 + $0x20] sm:$0xff]
        %v1826 = vld [vmem:[%s168 + $0x28] sm:$0xff]
        %v1827 = vld [vmem:[%s168 + $0x30] sm:$0xff]
        %v1828 = vld [vmem:[%s168 + $0x38] sm:$0xff]
        %v1829 = vld [vmem:[%s168 + $0x40] sm:$0x3]
        %v1830 = vld [vmem:[%s168 + $0x48] sm:$0x3]
        %v1831 = vld [vmem:[%s168 + $0x50] sm:$0x3]
        %v1832 = vld [vmem:[%s168 + $0x58] sm:$0x3]
        %v1845 = vrot.slane %v1821, 2
        %v1846 = vrot.slane %v1825, 2
        %v1847 = vsel %vm1478, %v1845, %v1846
        %v1848 = vrot.slane %v1822, 2
        %v1849 = vrot.slane %v1826, 2
        %v1850 = vsel %vm1478, %v1848, %v1849
        %v1851 = vrot.slane %v1823, 2
        %v1852 = vrot.slane %v1827, 2
        %v1853 = vsel %vm1478, %v1851, %v1852
        %v1854 = vrot.slane %v1824, 2
        %v1855 = vrot.slane %v1828, 2
        %v1856 = vsel %vm1478, %v1854, %v1855
        %v1857 = vrot.slane %v1829, 2
        %v1858 = vsel %vm1478, %v1846, %v1857
        %v1859 = vrot.slane %v1830, 2
        %v1860 = vsel %vm1478, %v1849, %v1859
        %v1861 = vrot.slane %v1831, 2
        %v1862 = vsel %vm1478, %v1852, %v1861
        %v1863 = vrot.slane %v1832, 2
        %v1864 = vsel %vm1478, %v1855, %v1863
        %1865 = vrot.lane.b32.xlu0 %v1847, 103
        %v1866 = vpop.permute.xlu0 %1865
        %1867 = vrot.lane.b32.xlu0 %v1850, 103
        %v1868 = vpop.permute.xlu0 %1867
        %1869 = vrot.lane.b32.xlu0 %v1853, 103
        %v1870 = vpop.permute.xlu0 %1869
        %1871 = vrot.lane.b32.xlu0 %v1856, 103
        %v1872 = vpop.permute.xlu0 %1871
        %1873 = vrot.lane.b32.xlu0 %v1858, 103
        %v1874 = vpop.permute.xlu0 %1873
        %1875 = vrot.lane.b32.xlu0 %v1860, 103
        %v1876 = vpop.permute.xlu0 %1875
        %1877 = vrot.lane.b32.xlu0 %v1862, 103
        %v1878 = vpop.permute.xlu0 %1877
        %1879 = vrot.lane.b32.xlu0 %v1864, 103
        %v1880 = vpop.permute.xlu0 %1879
        %v1881 = vsel %vm554, %v1866, %v1868
        %v1882 = vsel %vm554, %v1868, %v1870
        %v1883 = vsel %vm554, %v1870, %v1872
        %v1884 = vsel %vm554, %v1874, %v1876
        %v1885 = vsel %vm554, %v1876, %v1878
        %v1886 = vsel %vm554, %v1878, %v1880
        %v1893 = vmul.f32 %v1249, %v1881
        %v1894 = vmul.f32 %v1264, %v1882
        %v1895 = vmul.f32 %v1279, %v1883
        %v1896 = vmul.f32 %v1294, %v1884
        %v1897 = vmul.f32 %v1309, %v1885
        %v1898 = vmul.f32 %v1324, %v1886
        %1899 = vst [vmem:[#allocation3 + $0xc0] sm:$0xff] %v1893
        %1900 = vst [vmem:[#allocation3 + $0xc8] sm:$0xff] %v1894
        %1901 = vst [vmem:[#allocation3 + $0xd0] sm:$0xff] %v1895
        %1902 = vst [vmem:[#allocation3 + $0xd8] sm:$0xff] %v1896
        %1903 = vst [vmem:[#allocation3 + $0xe0] sm:$0xff] %v1897
        %1904 = vst [vmem:[#allocation3 + $0xe8] sm:$0xff] %v1898
        %1905 = vrot.lane.b32.xlu0 %v1249, 127
        %v1906 = vpop.permute.xlu0 %1905
        %1907 = vrot.lane.b32.xlu0 %v1294, 127
        %v1908 = vpop.permute.xlu0 %1907
        %1909 = vrot.lane.b32.xlu0 %v1264, 127
        %v1910 = vpop.permute.xlu0 %1909
        %1911 = vrot.lane.b32.xlu0 %v1309, 127
        %v1912 = vpop.permute.xlu0 %1911
        %1913 = vrot.lane.b32.xlu0 %v1279, 127
        %v1914 = vpop.permute.xlu0 %1913
        %1915 = vrot.lane.b32.xlu0 %v1324, 127
        %v1916 = vpop.permute.xlu0 %1915
        %vm1917 = vcmp.lt.s32.totalorder %v1452, 127
        %v1918 = vsel %vm1917, %v1910, %v1914
        %v1919 = vsel %vm1917, %v1912, %v1916
        %v1920 = vsel %vm1917, %v1906, %v1910
        %v1921 = vsel %vm1917, %v1908, %v1912
        %v1922 = vsel %vm1917, %v1914, %v1906
        %v1923 = vsel %vm1917, %v1916, %v1908
        %v1924 = vld [vmem:[%s168] sm:$0xfc]
        %v1925 = vld [vmem:[%s168 + $0x8] sm:$0xfc]
        %v1926 = vld [vmem:[%s168 + $0x10] sm:$0xfc]
        %v1927 = vld [vmem:[%s168 + $0x18] sm:$0xfc]
        %v1928 = vld [vmem:[%s168 + $0x20] sm:$0xff]
        %v1929 = vld [vmem:[%s168 + $0x28] sm:$0xff]
        %v1930 = vld [vmem:[%s168 + $0x30] sm:$0xff]
        %v1931 = vld [vmem:[%s168 + $0x38] sm:$0xff]
        %v1932 = vld [vmem:[%s168 + $0x40] sm:$0x3]
        %v1933 = vld [vmem:[%s168 + $0x48] sm:$0x3]
        %v1934 = vld [vmem:[%s168 + $0x50] sm:$0x3]
        %v1935 = vld [vmem:[%s168 + $0x58] sm:$0x3]
        %v1948 = vrot.slane %v1924, 2
        %v1949 = vrot.slane %v1928, 2
        %v1950 = vsel %vm1478, %v1948, %v1949
        %v1951 = vrot.slane %v1925, 2
        %v1952 = vrot.slane %v1929, 2
        %v1953 = vsel %vm1478, %v1951, %v1952
        %v1954 = vrot.slane %v1926, 2
        %v1955 = vrot.slane %v1930, 2
        %v1956 = vsel %vm1478, %v1954, %v1955
        %v1957 = vrot.slane %v1927, 2
        %v1958 = vrot.slane %v1931, 2
        %v1959 = vsel %vm1478, %v1957, %v1958
        %v1960 = vrot.slane %v1932, 2
        %v1961 = vsel %vm1478, %v1949, %v1960
        %v1962 = vrot.slane %v1933, 2
        %v1963 = vsel %vm1478, %v1952, %v1962
        %v1964 = vrot.slane %v1934, 2
        %v1965 = vsel %vm1478, %v1955, %v1964
        %v1966 = vrot.slane %v1935, 2
        %v1967 = vsel %vm1478, %v1958, %v1966
        %1968 = vrot.lane.b32.xlu0 %v1950, 102
        %v1969 = vpop.permute.xlu0 %1968
        %1970 = vrot.lane.b32.xlu0 %v1953, 102
        %v1971 = vpop.permute.xlu0 %1970
        %1972 = vrot.lane.b32.xlu0 %v1956, 102
        %v1973 = vpop.permute.xlu0 %1972
        %1974 = vrot.lane.b32.xlu0 %v1959, 102
        %v1975 = vpop.permute.xlu0 %1974
        %1976 = vrot.lane.b32.xlu0 %v1961, 102
        %v1977 = vpop.permute.xlu0 %1976
        %1978 = vrot.lane.b32.xlu0 %v1963, 102
        %v1979 = vpop.permute.xlu0 %1978
        %1980 = vrot.lane.b32.xlu0 %v1965, 102
        %v1981 = vpop.permute.xlu0 %1980
        %1982 = vrot.lane.b32.xlu0 %v1967, 102
        %v1983 = vpop.permute.xlu0 %1982
        %v1984 = vsel %vm630, %v1969, %v1971
        %v1985 = vsel %vm630, %v1971, %v1973
        %v1986 = vsel %vm630, %v1973, %v1975
        %v1987 = vsel %vm630, %v1977, %v1979
        %v1988 = vsel %vm630, %v1979, %v1981
        %v1989 = vsel %vm630, %v1981, %v1983
        %v1996 = vmul.f32 %v1920, %v1984
        %v1997 = vmul.f32 %v1918, %v1985
        %v1998 = vmul.f32 %v1922, %v1986
        %v1999 = vmul.f32 %v1921, %v1987
        %v2000 = vmul.f32 %v1919, %v1988
        %v2001 = vmul.f32 %v1923, %v1989
        %2002 = vst [vmem:[#allocation3 + $0xf0] sm:$0xff] %v1996
        %2003 = vst [vmem:[#allocation3 + $0xf8] sm:$0xff] %v1997
        %2004 = vst [vmem:[#allocation3 + $0x100] sm:$0xff] %v1998
        %2005 = vst [vmem:[#allocation3 + $0x108] sm:$0xff] %v1999
        %2006 = vst [vmem:[#allocation3 + $0x110] sm:$0xff] %v2000
        %2007 = vst [vmem:[#allocation3 + $0x118] sm:$0xff] %v2001
        %2008 = vrot.lane.b32.xlu0 %v1249, 105
        %v2009 = vpop.permute.xlu0 %2008
        %2010 = vrot.lane.b32.xlu0 %v1294, 105
        %v2011 = vpop.permute.xlu0 %2010
        %2012 = vrot.lane.b32.xlu0 %v1264, 105
        %v2013 = vpop.permute.xlu0 %2012
        %2014 = vrot.lane.b32.xlu0 %v1309, 105
        %v2015 = vpop.permute.xlu0 %2014
        %2016 = vrot.lane.b32.xlu0 %v1279, 105
        %v2017 = vpop.permute.xlu0 %2016
        %2018 = vrot.lane.b32.xlu0 %v1324, 105
        %v2019 = vpop.permute.xlu0 %2018
        %vm2020 = vcmp.lt.s32.totalorder %v1452, 105
        %v2021 = vsel %vm2020, %v2013, %v2017
        %v2022 = vsel %vm2020, %v2015, %v2019
        %v2023 = vsel %vm2020, %v2009, %v2013
        %v2024 = vsel %vm2020, %v2011, %v2015
        %v2025 = vsel %vm2020, %v2017, %v2009
        %v2026 = vsel %vm2020, %v2019, %v2011
        %v2027 = vld [vmem:[%s168] sm:$0xfc]
        %v2028 = vld [vmem:[%s168 + $0x8] sm:$0xfc]
        %v2029 = vld [vmem:[%s168 + $0x10] sm:$0xfc]
        %v2030 = vld [vmem:[%s168 + $0x18] sm:$0xfc]
        %v2031 = vld [vmem:[%s168 + $0x20] sm:$0xff]
        %v2032 = vld [vmem:[%s168 + $0x28] sm:$0xff]
        %v2033 = vld [vmem:[%s168 + $0x30] sm:$0xff]
        %v2034 = vld [vmem:[%s168 + $0x38] sm:$0xff]
        %v2035 = vld [vmem:[%s168 + $0x40] sm:$0x3]
        %v2036 = vld [vmem:[%s168 + $0x48] sm:$0x3]
        %v2037 = vld [vmem:[%s168 + $0x50] sm:$0x3]
        %v2038 = vld [vmem:[%s168 + $0x58] sm:$0x3]
        %v2051 = vrot.slane %v2027, 2
        %v2052 = vrot.slane %v2031, 2
        %v2053 = vsel %vm1478, %v2051, %v2052
        %v2054 = vrot.slane %v2028, 2
        %v2055 = vrot.slane %v2032, 2
        %v2056 = vsel %vm1478, %v2054, %v2055
        %v2057 = vrot.slane %v2029, 2
        %v2058 = vrot.slane %v2033, 2
        %v2059 = vsel %vm1478, %v2057, %v2058
        %v2060 = vrot.slane %v2030, 2
        %v2061 = vrot.slane %v2034, 2
        %v2062 = vsel %vm1478, %v2060, %v2061
        %v2063 = vrot.slane %v2035, 2
        %v2064 = vsel %vm1478, %v2052, %v2063
        %v2065 = vrot.slane %v2036, 2
        %v2066 = vsel %vm1478, %v2055, %v2065
        %v2067 = vrot.slane %v2037, 2
        %v2068 = vsel %vm1478, %v2058, %v2067
        %v2069 = vrot.slane %v2038, 2
        %v2070 = vsel %vm1478, %v2061, %v2069
        %2071 = vrot.lane.b32.xlu0 %v2053, 80
        %v2072 = vpop.permute.xlu0 %2071
        %2073 = vrot.lane.b32.xlu0 %v2056, 80
        %v2074 = vpop.permute.xlu0 %2073
        %2075 = vrot.lane.b32.xlu0 %v2059, 80
        %v2076 = vpop.permute.xlu0 %2075
        %2077 = vrot.lane.b32.xlu0 %v2062, 80
        %v2078 = vpop.permute.xlu0 %2077
        %2079 = vrot.lane.b32.xlu0 %v2064, 80
        %v2080 = vpop.permute.xlu0 %2079
        %2081 = vrot.lane.b32.xlu0 %v2066, 80
        %v2082 = vpop.permute.xlu0 %2081
        %2083 = vrot.lane.b32.xlu0 %v2068, 80
        %v2084 = vpop.permute.xlu0 %2083
        %2085 = vrot.lane.b32.xlu0 %v2070, 80
        %v2086 = vpop.permute.xlu0 %2085
        %v2087 = vsel %vm706, %v2072, %v2074
        %v2088 = vsel %vm706, %v2074, %v2076
        %v2089 = vsel %vm706, %v2076, %v2078
        %v2090 = vsel %vm706, %v2080, %v2082
        %v2091 = vsel %vm706, %v2082, %v2084
        %v2092 = vsel %vm706, %v2084, %v2086
        %v2099 = vmul.f32 %v2023, %v2087
        %v2100 = vmul.f32 %v2021, %v2088
        %v2101 = vmul.f32 %v2025, %v2089
        %v2102 = vmul.f32 %v2024, %v2090
        %v2103 = vmul.f32 %v2022, %v2091
        %v2104 = vmul.f32 %v2026, %v2092
        %2105 = vst [vmem:[#allocation3 + $0x120] sm:$0xff] %v2099
        %2106 = vst [vmem:[#allocation3 + $0x128] sm:$0xff] %v2100
        %2107 = vst [vmem:[#allocation3 + $0x130] sm:$0xff] %v2101
        %2108 = vst [vmem:[#allocation3 + $0x138] sm:$0xff] %v2102
        %2109 = vst [vmem:[#allocation3 + $0x140] sm:$0xff] %v2103
        %2110 = vst [vmem:[#allocation3 + $0x148] sm:$0xff] %v2104
        %2111 = vrot.lane.b32.xlu0 %v1249, 104
        %v2112 = vpop.permute.xlu0 %2111
        %2113 = vrot.lane.b32.xlu0 %v1294, 104
        %v2114 = vpop.permute.xlu0 %2113
        %2115 = vrot.lane.b32.xlu0 %v1264, 104
        %v2116 = vpop.permute.xlu0 %2115
        %2117 = vrot.lane.b32.xlu0 %v1309, 104
        %v2118 = vpop.permute.xlu0 %2117
        %2119 = vrot.lane.b32.xlu0 %v1279, 104
        %v2120 = vpop.permute.xlu0 %2119
        %2121 = vrot.lane.b32.xlu0 %v1324, 104
        %v2122 = vpop.permute.xlu0 %2121
        %vm2123 = vcmp.lt.s32.totalorder %v1452, 104
        %v2124 = vsel %vm2123, %v2116, %v2120
        %v2125 = vsel %vm2123, %v2118, %v2122
        %v2126 = vsel %vm2123, %v2112, %v2116
        %v2127 = vsel %vm2123, %v2114, %v2118
        %v2128 = vsel %vm2123, %v2120, %v2112
        %v2129 = vsel %vm2123, %v2122, %v2114
        %v2130 = vld [vmem:[%s168] sm:$0xfc]
        %v2131 = vld [vmem:[%s168 + $0x8] sm:$0xfc]
        %v2132 = vld [vmem:[%s168 + $0x10] sm:$0xfc]
        %v2133 = vld [vmem:[%s168 + $0x18] sm:$0xfc]
        %v2134 = vld [vmem:[%s168 + $0x20] sm:$0xff]
        %v2135 = vld [vmem:[%s168 + $0x28] sm:$0xff]
        %v2136 = vld [vmem:[%s168 + $0x30] sm:$0xff]
        %v2137 = vld [vmem:[%s168 + $0x38] sm:$0xff]
        %v2138 = vld [vmem:[%s168 + $0x40] sm:$0x3]
        %v2139 = vld [vmem:[%s168 + $0x48] sm:$0x3]
        %v2140 = vld [vmem:[%s168 + $0x50] sm:$0x3]
        %v2141 = vld [vmem:[%s168 + $0x58] sm:$0x3]
        %v2154 = vrot.slane %v2130, 2
        %v2155 = vrot.slane %v2134, 2
        %v2156 = vsel %vm1478, %v2154, %v2155
        %v2157 = vrot.slane %v2131, 2
        %v2158 = vrot.slane %v2135, 2
        %v2159 = vsel %vm1478, %v2157, %v2158
        %v2160 = vrot.slane %v2132, 2
        %v2161 = vrot.slane %v2136, 2
        %v2162 = vsel %vm1478, %v2160, %v2161
        %v2163 = vrot.slane %v2133, 2
        %v2164 = vrot.slane %v2137, 2
        %v2165 = vsel %vm1478, %v2163, %v2164
        %v2166 = vrot.slane %v2138, 2
        %v2167 = vsel %vm1478, %v2155, %v2166
        %v2168 = vrot.slane %v2139, 2
        %v2169 = vsel %vm1478, %v2158, %v2168
        %v2170 = vrot.slane %v2140, 2
        %v2171 = vsel %vm1478, %v2161, %v2170
        %v2172 = vrot.slane %v2141, 2
        %v2173 = vsel %vm1478, %v2164, %v2172
        %2174 = vrot.lane.b32.xlu0 %v2156, 79
        %v2175 = vpop.permute.xlu0 %2174
        %2176 = vrot.lane.b32.xlu0 %v2159, 79
        %v2177 = vpop.permute.xlu0 %2176
        %2178 = vrot.lane.b32.xlu0 %v2162, 79
        %v2179 = vpop.permute.xlu0 %2178
        %2180 = vrot.lane.b32.xlu0 %v2165, 79
        %v2181 = vpop.permute.xlu0 %2180
        %2182 = vrot.lane.b32.xlu0 %v2167, 79
        %v2183 = vpop.permute.xlu0 %2182
        %2184 = vrot.lane.b32.xlu0 %v2169, 79
        %v2185 = vpop.permute.xlu0 %2184
        %2186 = vrot.lane.b32.xlu0 %v2171, 79
        %v2187 = vpop.permute.xlu0 %2186
        %2188 = vrot.lane.b32.xlu0 %v2173, 79
        %v2189 = vpop.permute.xlu0 %2188
        %v2190 = vsel %vm782, %v2175, %v2177
        %v2191 = vsel %vm782, %v2177, %v2179
        %v2192 = vsel %vm782, %v2179, %v2181
        %v2193 = vsel %vm782, %v2183, %v2185
        %v2194 = vsel %vm782, %v2185, %v2187
        %v2195 = vsel %vm782, %v2187, %v2189
        %v2202 = vmul.f32 %v2126, %v2190
        %v2203 = vmul.f32 %v2124, %v2191
        %v2204 = vmul.f32 %v2128, %v2192
        %v2205 = vmul.f32 %v2127, %v2193
        %v2206 = vmul.f32 %v2125, %v2194
        %v2207 = vmul.f32 %v2129, %v2195
        %2208 = vst [vmem:[#allocation3 + $0x150] sm:$0xff] %v2202
        %2209 = vst [vmem:[#allocation3 + $0x158] sm:$0xff] %v2203
        %2210 = vst [vmem:[#allocation3 + $0x160] sm:$0xff] %v2204
        %2211 = vst [vmem:[#allocation3 + $0x168] sm:$0xff] %v2205
        %2212 = vst [vmem:[#allocation3 + $0x170] sm:$0xff] %v2206
        %2213 = vst [vmem:[#allocation3 + $0x178] sm:$0xff] %v2207
        %2214 = vrot.lane.b32.xlu0 %v1249, 103
        %v2215 = vpop.permute.xlu0 %2214
        %2216 = vrot.lane.b32.xlu0 %v1294, 103
        %v2217 = vpop.permute.xlu0 %2216
        %2218 = vrot.lane.b32.xlu0 %v1264, 103
        %v2219 = vpop.permute.xlu0 %2218
        %2220 = vrot.lane.b32.xlu0 %v1309, 103
        %v2221 = vpop.permute.xlu0 %2220
        %2222 = vrot.lane.b32.xlu0 %v1279, 103
        %v2223 = vpop.permute.xlu0 %2222
        %2224 = vrot.lane.b32.xlu0 %v1324, 103
        %v2225 = vpop.permute.xlu0 %2224
        %vm2226 = vcmp.lt.s32.totalorder %v1452, 103
        %v2227 = vsel %vm2226, %v2219, %v2223
        %v2228 = vsel %vm2226, %v2221, %v2225
        %v2229 = vsel %vm2226, %v2215, %v2219
        %v2230 = vsel %vm2226, %v2217, %v2221
        %v2231 = vsel %vm2226, %v2223, %v2215
        %v2232 = vsel %vm2226, %v2225, %v2217
        %v2233 = vld [vmem:[%s168] sm:$0xfc]
        %v2234 = vld [vmem:[%s168 + $0x8] sm:$0xfc]
        %v2235 = vld [vmem:[%s168 + $0x10] sm:$0xfc]
        %v2236 = vld [vmem:[%s168 + $0x18] sm:$0xfc]
        %v2237 = vld [vmem:[%s168 + $0x20] sm:$0xff]
        %v2238 = vld [vmem:[%s168 + $0x28] sm:$0xff]
        %v2239 = vld [vmem:[%s168 + $0x30] sm:$0xff]
        %v2240 = vld [vmem:[%s168 + $0x38] sm:$0xff]
        %v2241 = vld [vmem:[%s168 + $0x40] sm:$0x3]
        %v2242 = vld [vmem:[%s168 + $0x48] sm:$0x3]
        %v2243 = vld [vmem:[%s168 + $0x50] sm:$0x3]
        %v2244 = vld [vmem:[%s168 + $0x58] sm:$0x3]
        %v2257 = vrot.slane %v2233, 2
        %v2258 = vrot.slane %v2237, 2
        %v2259 = vsel %vm1478, %v2257, %v2258
        %v2260 = vrot.slane %v2234, 2
        %v2261 = vrot.slane %v2238, 2
        %v2262 = vsel %vm1478, %v2260, %v2261
        %v2263 = vrot.slane %v2235, 2
        %v2264 = vrot.slane %v2239, 2
        %v2265 = vsel %vm1478, %v2263, %v2264
        %v2266 = vrot.slane %v2236, 2
        %v2267 = vrot.slane %v2240, 2
        %v2268 = vsel %vm1478, %v2266, %v2267
        %v2269 = vrot.slane %v2241, 2
        %v2270 = vsel %vm1478, %v2258, %v2269
        %v2271 = vrot.slane %v2242, 2
        %v2272 = vsel %vm1478, %v2261, %v2271
        %v2273 = vrot.slane %v2243, 2
        %v2274 = vsel %vm1478, %v2264, %v2273
        %v2275 = vrot.slane %v2244, 2
        %v2276 = vsel %vm1478, %v2267, %v2275
        %2277 = vrot.lane.b32.xlu0 %v2259, 78
        %v2278 = vpop.permute.xlu0 %2277
        %2279 = vrot.lane.b32.xlu0 %v2262, 78
        %v2280 = vpop.permute.xlu0 %2279
        %2281 = vrot.lane.b32.xlu0 %v2265, 78
        %v2282 = vpop.permute.xlu0 %2281
        %2283 = vrot.lane.b32.xlu0 %v2268, 78
        %v2284 = vpop.permute.xlu0 %2283
        %2285 = vrot.lane.b32.xlu0 %v2270, 78
        %v2286 = vpop.permute.xlu0 %2285
        %2287 = vrot.lane.b32.xlu0 %v2272, 78
        %v2288 = vpop.permute.xlu0 %2287
        %2289 = vrot.lane.b32.xlu0 %v2274, 78
        %v2290 = vpop.permute.xlu0 %2289
        %2291 = vrot.lane.b32.xlu0 %v2276, 78
        %v2292 = vpop.permute.xlu0 %2291
        %v2293 = vsel %vm858, %v2278, %v2280
        %v2294 = vsel %vm858, %v2280, %v2282
        %v2295 = vsel %vm858, %v2282, %v2284
        %v2296 = vsel %vm858, %v2286, %v2288
        %v2297 = vsel %vm858, %v2288, %v2290
        %v2298 = vsel %vm858, %v2290, %v2292
        %v2305 = vmul.f32 %v2229, %v2293
        %v2306 = vmul.f32 %v2227, %v2294
        %v2307 = vmul.f32 %v2231, %v2295
        %v2308 = vmul.f32 %v2230, %v2296
        %v2309 = vmul.f32 %v2228, %v2297
        %v2310 = vmul.f32 %v2232, %v2298
        %2311 = vst [vmem:[#allocation3 + $0x180] sm:$0xff] %v2305
        %2312 = vst [vmem:[#allocation3 + $0x188] sm:$0xff] %v2306
        %2313 = vst [vmem:[#allocation3 + $0x190] sm:$0xff] %v2307
        %2314 = vst [vmem:[#allocation3 + $0x198] sm:$0xff] %v2308
        %2315 = vst [vmem:[#allocation3 + $0x1a0] sm:$0xff] %v2309
        %2316 = vst [vmem:[#allocation3 + $0x1a8] sm:$0xff] %v2310
        %v2317 = vld [vmem:[%s2] sm:$0xff]
        %v2318 = vld [vmem:[%s2 + $0x8] sm:$0xff]
        %v2319 = vld [vmem:[%s2 + $0x10] sm:$0xff]
        %v2320 = vld [vmem:[%s2 + $0x18] sm:$0xff]
        %v2321 = vld [vmem:[#allocation3] sm:$0xff]
        %v2322 = vld [vmem:[#allocation3 + $0x8] sm:$0xff]
        %v2323 = vld [vmem:[#allocation3 + $0x10] sm:$0xff]
        %v2324 = vld [vmem:[#allocation3 + $0x18] sm:$0xff]
        %v2325 = vld [vmem:[#allocation3 + $0x20] sm:$0xff]
        %v2326 = vld [vmem:[#allocation3 + $0x28] sm:$0xff]
        %v2327 = vld [vmem:[#allocation3 + $0x30] sm:$0xff]
        %v2328 = vld [vmem:[#allocation3 + $0x38] sm:$0xff]
        %v2329 = vld [vmem:[#allocation3 + $0x40] sm:$0xff]
        %v2330 = vld [vmem:[#allocation3 + $0x48] sm:$0xff]
        %v2331 = vld [vmem:[#allocation3 + $0x50] sm:$0xff]
        %v2332 = vld [vmem:[#allocation3 + $0x58] sm:$0xff]
        %v2333 = vld [vmem:[#allocation3 + $0x60] sm:$0xff]
        %v2334 = vld [vmem:[#allocation3 + $0x68] sm:$0xff]
        %v2335 = vld [vmem:[#allocation3 + $0x70] sm:$0xff]
        %v2336 = vld [vmem:[#allocation3 + $0x78] sm:$0xff]
        %v2337 = vld [vmem:[#allocation3 + $0x80] sm:$0xff]
        %v2338 = vld [vmem:[#allocation3 + $0x88] sm:$0xff]
        %v2339 = vld [vmem:[#allocation3 + $0x90] sm:$0xff]
        %v2340 = vld [vmem:[#allocation3 + $0x98] sm:$0xff]
        %v2341 = vld [vmem:[#allocation3 + $0xa0] sm:$0xff]
        %v2342 = vld [vmem:[#allocation3 + $0xa8] sm:$0xff]
        %v2343 = vld [vmem:[#allocation3 + $0xb0] sm:$0xff]
        %v2344 = vld [vmem:[#allocation3 + $0xb8] sm:$0xff]
        %v2345 = vld [vmem:[#allocation3 + $0xc0] sm:$0xff]
        %v2346 = vld [vmem:[#allocation3 + $0xc8] sm:$0xff]
        %v2347 = vld [vmem:[#allocation3 + $0xd0] sm:$0xff]
        %v2348 = vld [vmem:[#allocation3 + $0xd8] sm:$0xff]
        %v2349 = vld [vmem:[#allocation3 + $0xe0] sm:$0xff]
        %v2350 = vld [vmem:[#allocation3 + $0xe8] sm:$0xff]
        %v2351 = vld [vmem:[#allocation3 + $0xf0] sm:$0xff]
        %v2352 = vld [vmem:[#allocation3 + $0xf8] sm:$0xff]
        %v2353 = vld [vmem:[#allocation3 + $0x100] sm:$0xff]
        %v2354 = vld [vmem:[#allocation3 + $0x108] sm:$0xff]
        %v2355 = vld [vmem:[#allocation3 + $0x110] sm:$0xff]
        %v2356 = vld [vmem:[#allocation3 + $0x118] sm:$0xff]
        %v2357 = vld [vmem:[#allocation3 + $0x120] sm:$0xff]
        %v2358 = vld [vmem:[#allocation3 + $0x128] sm:$0xff]
        %v2359 = vld [vmem:[#allocation3 + $0x130] sm:$0xff]
        %v2360 = vld [vmem:[#allocation3 + $0x138] sm:$0xff]
        %v2361 = vld [vmem:[#allocation3 + $0x140] sm:$0xff]
        %v2362 = vld [vmem:[#allocation3 + $0x148] sm:$0xff]
        %v2363 = vld [vmem:[#allocation3 + $0x150] sm:$0xff]
        %v2364 = vld [vmem:[#allocation3 + $0x158] sm:$0xff]
        %v2365 = vld [vmem:[#allocation3 + $0x160] sm:$0xff]
        %v2366 = vld [vmem:[#allocation3 + $0x168] sm:$0xff]
        %v2367 = vld [vmem:[#allocation3 + $0x170] sm:$0xff]
        %v2368 = vld [vmem:[#allocation3 + $0x178] sm:$0xff]
        %v2369 = vld [vmem:[#allocation3 + $0x180] sm:$0xff]
        %v2370 = vld [vmem:[#allocation3 + $0x188] sm:$0xff]
        %v2371 = vld [vmem:[#allocation3 + $0x190] sm:$0xff]
        %v2372 = vld [vmem:[#allocation3 + $0x198] sm:$0xff]
        %v2373 = vld [vmem:[#allocation3 + $0x1a0] sm:$0xff]
        %v2374 = vld [vmem:[#allocation3 + $0x1a8] sm:$0xff]
        %vm2375 = vcmask 130048
        %v2377 = vsel %vm2375, %v2318, 0
        %v2380 = vsel %vm2375, %v2320, 0
        %2382 = vmatpush.msra.mxu0 %v2366
        %2383 = vmatpush.msra.mxu0 %v2363
        %2384 = vmatpush.msra.mxu0 %v2360
        %2385 = vmatpush.msra.mxu0 %v2357
        %2386 = vmatpush.msra.mxu0 %v2354
        %2387 = vmatpush.msra.mxu0 %v2351
        %2388 = vmatpush.msra.mxu0 %v2348
        %2389 = vmatpush.msra.mxu0 %v2345
        %2390 = vmatpush.msra.mxu0 %v2342
        %2391 = vmatpush.msra.mxu0 %v2339
        %2392 = vmatpush.msra.mxu0 %v2336
        %2393 = vmatpush.msra.mxu0 %v2333
        %2394 = vmatpush.msra.mxu0 %v2330
        %2395 = vmatpush.msra.mxu0 %v2327
        %2396 = vmatpush.msra.mxu0 %v2324
        %2397 = vmatpush.msra.mxu0 %v2321
        %2398 = vmatmul.f32.gmra.mxu0 %v2317
        %v2399 = vpop.f32.mrf.mxu0
        %v2400 = vadd.f32 0.0, %v2399
        %2401 = vmatmul.f32.gmra.mxu0 %v2319
        %v2402 = vpop.f32.mrf.mxu0
        %v2403 = vadd.f32 0.0, %v2402
        %2404 = vdwg.mxu0
        %2405 = vmatpush.msra.mxu0 0.0
        %2406 = vmatpush.msra.mxu0 0.0
        %2407 = vmatpush.msra.mxu0 0.0
        %2408 = vmatpush.msra.mxu0 0.0
        %2409 = vmatpush.msra.mxu0 0.0
        %2410 = vmatpush.msra.mxu0 0.0
        %2411 = vmatpush.msra.mxu0 0.0
        %2412 = vmatpush.msra.mxu0 0.0
        %2413 = vmatpush.msra.mxu0 0.0
        %2414 = vmatpush.msra.mxu0 0.0
        %2415 = vmatpush.msra.mxu0 0.0
        %2416 = vmatpush.msra.mxu0 0.0
        %2417 = vmatpush.msra.mxu0 0.0
        %2418 = vmatpush.msra.mxu0 0.0
        %2419 = vmatpush.msra.mxu0 %v2372
        %2420 = vmatpush.msra.mxu0 %v2369
        %2421 = vmatmul.f32.gmra.mxu0 %v2377
        %v2422 = vpop.f32.mrf.mxu0
        %v2423 = vadd.f32 %v2400, %v2422
        %2424 = vmatmul.f32.gmra.mxu0 %v2380
        %v2425 = vpop.f32.mrf.mxu0
        %v2426 = vadd.f32 %v2403, %v2425
        %2427 = vdwg.mxu0
        %2428 = vmatpush.msra.mxu0 %v2367
        %2429 = vmatpush.msra.mxu0 %v2364
        %2430 = vmatpush.msra.mxu0 %v2361
        %2431 = vmatpush.msra.mxu0 %v2358
        %2432 = vmatpush.msra.mxu0 %v2355
        %2433 = vmatpush.msra.mxu0 %v2352
        %2434 = vmatpush.msra.mxu0 %v2349
        %2435 = vmatpush.msra.mxu0 %v2346
        %2436 = vmatpush.msra.mxu0 %v2343
        %2437 = vmatpush.msra.mxu0 %v2340
        %2438 = vmatpush.msra.mxu0 %v2337
        %2439 = vmatpush.msra.mxu0 %v2334
        %2440 = vmatpush.msra.mxu0 %v2331
        %2441 = vmatpush.msra.mxu0 %v2328
        %2442 = vmatpush.msra.mxu0 %v2325
        %2443 = vmatpush.msra.mxu0 %v2322
        %2444 = vmatmul.f32.gmra.mxu0 %v2317
        %v2445 = vpop.f32.mrf.mxu0
        %v2446 = vadd.f32 0.0, %v2445
        %2447 = vmatmul.f32.gmra.mxu0 %v2319
        %v2448 = vpop.f32.mrf.mxu0
        %v2449 = vadd.f32 0.0, %v2448
        %2450 = vdwg.mxu0
        %2451 = vmatpush.msra.mxu0 0.0
        %2452 = vmatpush.msra.mxu0 0.0
        %2453 = vmatpush.msra.mxu0 0.0
        %2454 = vmatpush.msra.mxu0 0.0
        %2455 = vmatpush.msra.mxu0 0.0
        %2456 = vmatpush.msra.mxu0 0.0
        %2457 = vmatpush.msra.mxu0 0.0
        %2458 = vmatpush.msra.mxu0 0.0
        %2459 = vmatpush.msra.mxu0 0.0
        %2460 = vmatpush.msra.mxu0 0.0
        %2461 = vmatpush.msra.mxu0 0.0
        %2462 = vmatpush.msra.mxu0 0.0
        %2463 = vmatpush.msra.mxu0 0.0
        %2464 = vmatpush.msra.mxu0 0.0
        %2465 = vmatpush.msra.mxu0 %v2373
        %2466 = vmatpush.msra.mxu0 %v2370
        %2467 = vmatmul.f32.gmra.mxu0 %v2377
        %v2468 = vpop.f32.mrf.mxu0
        %v2469 = vadd.f32 %v2446, %v2468
        %2470 = vmatmul.f32.gmra.mxu0 %v2380
        %v2471 = vpop.f32.mrf.mxu0
        %v2472 = vadd.f32 %v2449, %v2471
        %2473 = vdwg.mxu0
        %2474 = vmatpush.msra.mxu0 %v2368
        %2475 = vmatpush.msra.mxu0 %v2365
        %2476 = vmatpush.msra.mxu0 %v2362
        %2477 = vmatpush.msra.mxu0 %v2359
        %2478 = vmatpush.msra.mxu0 %v2356
        %2479 = vmatpush.msra.mxu0 %v2353
        %2480 = vmatpush.msra.mxu0 %v2350
        %2481 = vmatpush.msra.mxu0 %v2347
        %2482 = vmatpush.msra.mxu0 %v2344
        %2483 = vmatpush.msra.mxu0 %v2341
        %2484 = vmatpush.msra.mxu0 %v2338
        %2485 = vmatpush.msra.mxu0 %v2335
        %2486 = vmatpush.msra.mxu0 %v2332
        %2487 = vmatpush.msra.mxu0 %v2329
        %2488 = vmatpush.msra.mxu0 %v2326
        %2489 = vmatpush.msra.mxu0 %v2323
        %2490 = vmatmul.f32.gmra.mxu0 %v2317
        %v2491 = vpop.f32.mrf.mxu0
        %v2492 = vadd.f32 0.0, %v2491
        %2493 = vmatmul.f32.gmra.mxu0 %v2319
        %v2494 = vpop.f32.mrf.mxu0
        %v2495 = vadd.f32 0.0, %v2494
        %2496 = vdwg.mxu0
        %2497 = vmatpush.msra.mxu0 0.0
        %2498 = vmatpush.msra.mxu0 0.0
        %2499 = vmatpush.msra.mxu0 0.0
        %2500 = vmatpush.msra.mxu0 0.0
        %2501 = vmatpush.msra.mxu0 0.0
        %2502 = vmatpush.msra.mxu0 0.0
        %2503 = vmatpush.msra.mxu0 0.0
        %2504 = vmatpush.msra.mxu0 0.0
        %2505 = vmatpush.msra.mxu0 0.0
        %2506 = vmatpush.msra.mxu0 0.0
        %2507 = vmatpush.msra.mxu0 0.0
        %2508 = vmatpush.msra.mxu0 0.0
        %2509 = vmatpush.msra.mxu0 0.0
        %2510 = vmatpush.msra.mxu0 0.0
        %2511 = vmatpush.msra.mxu0 %v2374
        %2512 = vmatpush.msra.mxu0 %v2371
        %2513 = vmatmul.f32.gmra.mxu0 %v2377
        %v2514 = vpop.f32.mrf.mxu0
        %v2515 = vadd.f32 %v2492, %v2514
        %2516 = vmatmul.f32.gmra.mxu0 %v2380
        %v2517 = vpop.f32.mrf.mxu0
        %v2518 = vadd.f32 %v2495, %v2517
        %2519 = vdwg.mxu0
        %v2520 = vadd.f32 %v1066, %v2423
        %v2521 = vadd.f32 %v1136, %v2469
        %v2522 = vadd.f32 %v1206, %v2515
        %v2523 = vadd.f32 %v1069, %v2426
        %v2524 = vadd.f32 %v1139, %v2472
        %v2525 = vadd.f32 %v1209, %v2518
        %v2526 = vld [vmem:[%s168] sm:$0xfc]
        %v2527 = vld [vmem:[%s168 + $0x8] sm:$0xfc]
        %v2528 = vld [vmem:[%s168 + $0x10] sm:$0xfc]
        %v2529 = vld [vmem:[%s168 + $0x18] sm:$0xfc]
        %v2530 = vld [vmem:[%s168 + $0x20] sm:$0xff]
        %v2531 = vld [vmem:[%s168 + $0x28] sm:$0xff]
        %v2532 = vld [vmem:[%s168 + $0x30] sm:$0xff]
        %v2533 = vld [vmem:[%s168 + $0x38] sm:$0xff]
        %v2534 = vld [vmem:[%s168 + $0x40] sm:$0x3]
        %v2535 = vld [vmem:[%s168 + $0x48] sm:$0x3]
        %v2536 = vld [vmem:[%s168 + $0x50] sm:$0x3]
        %v2537 = vld [vmem:[%s168 + $0x58] sm:$0x3]
        %v2538 = vsub.f32 1.0, %v1363
        %v2539 = vsub.f32 1.0, %v1378
        %v2540 = vsub.f32 1.0, %v1393
        %v2541 = vsub.f32 1.0, %v1408
        %v2542 = vsub.f32 1.0, %v1423
        %v2543 = vsub.f32 1.0, %v1438
        %v2556 = vrot.slane %v2526, 2
        %v2557 = vrot.slane %v2530, 2
        %v2558 = vsel %vm1478, %v2556, %v2557
        %v2559 = vrot.slane %v2527, 2
        %v2560 = vrot.slane %v2531, 2
        %v2561 = vsel %vm1478, %v2559, %v2560
        %v2562 = vrot.slane %v2528, 2
        %v2563 = vrot.slane %v2532, 2
        %v2564 = vsel %vm1478, %v2562, %v2563
        %v2565 = vrot.slane %v2529, 2
        %v2566 = vrot.slane %v2533, 2
        %v2567 = vsel %vm1478, %v2565, %v2566
        %v2568 = vrot.slane %v2534, 2
        %v2569 = vsel %vm1478, %v2557, %v2568
        %v2570 = vrot.slane %v2535, 2
        %v2571 = vsel %vm1478, %v2560, %v2570
        %v2572 = vrot.slane %v2536, 2
        %v2573 = vsel %vm1478, %v2563, %v2572
        %v2574 = vrot.slane %v2537, 2
        %v2575 = vsel %vm1478, %v2566, %v2574
        %2576 = vrot.lane.b32.xlu0 %v2558, 103
        %v2577 = vpop.permute.xlu0 %2576
        %2578 = vrot.lane.b32.xlu0 %v2561, 103
        %v2579 = vpop.permute.xlu0 %2578
        %2580 = vrot.lane.b32.xlu0 %v2564, 103
        %v2581 = vpop.permute.xlu0 %2580
        %2582 = vrot.lane.b32.xlu0 %v2567, 103
        %v2583 = vpop.permute.xlu0 %2582
        %2584 = vrot.lane.b32.xlu0 %v2569, 103
        %v2585 = vpop.permute.xlu0 %2584
        %2586 = vrot.lane.b32.xlu0 %v2571, 103
        %v2587 = vpop.permute.xlu0 %2586
        %2588 = vrot.lane.b32.xlu0 %v2573, 103
        %v2589 = vpop.permute.xlu0 %2588
        %2590 = vrot.lane.b32.xlu0 %v2575, 103
        %v2591 = vpop.permute.xlu0 %2590
        %v2592 = vsel %vm554, %v2577, %v2579
        %v2593 = vsel %vm554, %v2579, %v2581
        %v2594 = vsel %vm554, %v2581, %v2583
        %v2595 = vsel %vm554, %v2585, %v2587
        %v2596 = vsel %vm554, %v2587, %v2589
        %v2597 = vsel %vm554, %v2589, %v2591
        %v2604 = vmul.f32 %v2538, %v2592
        %v2605 = vmul.f32 %v2539, %v2593
        %v2606 = vmul.f32 %v2540, %v2594
        %v2607 = vmul.f32 %v2541, %v2595
        %v2608 = vmul.f32 %v2542, %v2596
        %v2609 = vmul.f32 %v2543, %v2597
        %v2610 = vtanh.pop %v2520
        %v2611 = vtanh.pop %v2521
        %v2612 = vtanh.pop %v2522
        %v2613 = vtanh.pop %v2523
        %v2614 = vtanh.pop %v2524
        %v2615 = vtanh.pop %v2525
        %v2616 = vmul.f32 %v1363, %v2610
        %v2617 = vmul.f32 %v1378, %v2611
        %v2618 = vmul.f32 %v1393, %v2612
        %v2619 = vmul.f32 %v1408, %v2613
        %v2620 = vmul.f32 %v1423, %v2614
        %v2621 = vmul.f32 %v1438, %v2615
        %v2622 = vadd.f32 %v2604, %v2616
        %v2623 = vadd.f32 %v2605, %v2617
        %v2624 = vadd.f32 %v2606, %v2618
        %v2625 = vadd.f32 %v2607, %v2619
        %v2626 = vadd.f32 %v2608, %v2620
        %v2627 = vadd.f32 %v2609, %v2621
        %2628 = vst [vmem:[%s163] sm:$0xff] %v2622
        %2629 = vst [vmem:[%s163 + $0x8] sm:$0xff] %v2623
        %2630 = vst [vmem:[%s163 + $0x10] sm:$0xff] %v2624
        %2631 = vst [vmem:[%s163 + $0x18] sm:$0xff] %v2625
        %2632 = vst [vmem:[%s163 + $0x20] sm:$0xff] %v2626
        %2633 = vst [vmem:[%s163 + $0x28] sm:$0xff] %v2627
        %s2634 = sand.u32 %s93, 1
        %s2635 = scalar_lea.sflag [#allocation5], %s2634
        %s2636 = sand.u32 %s93, 1
        %s2637 = smul.addr %s2636, 48
        %s2638 = scalar_lea.vmem [#allocation4], %s2637
        // Predicated region
        $region33: #{tpu_custom_call.1} parent=31 // pred_check
          %p2639 = pneg %p103
        $region34: #{tpu_custom_call.1} parent=31 // pred_check_branch
          %2641 = sbr.rel (%p2639) target = $region36
        $region35: #{tpu_custom_call.1} parent=31 // pred_region
          %2643 = vsyncadd %s2635, 0
          %s2644 = smul.addr %s17, 6
          %s2645 = smul.addr %s2644, 8
          %s2646 = scalar_lea.hbm %s3, %s2645
          %s2647 = sshll.u32 %s2638, 4
          %s2648 = int_to_ptr.vmem [resolvable:$true] %s2647
          %s2649 = sshll.u32 %s2646, 4
          %s2650 = int_to_ptr.hbm [resolvable:$true] %s2649
          %2655 = dma.vmem_to_hbm [thread:$0]  %s2648, 768, %s2650, %s2635, 384, 384, 24
        $region36: #{tpu_custom_call.1} parent=31 // pred_fallthru
          _
      $region32: #{tpu_custom_call.1} parent=5 // pred_fallthru
        _
      %p2656 = scmp.le.s32.totalorder 2, %s12
      // Predicated region
      $region37: #{tpu_custom_call.1} parent=5 // pred_check
        %p2657 = pneg %p2656
      $region38: #{tpu_custom_call.1} parent=5 // pred_check_branch
        %2659 = sbr.rel (%p2657) target = $region40
      $region39: #{tpu_custom_call.1} parent=5 // pred_region
        %s2660 = ssub.s32 %s12, 2
        // Predicated region
        $region41: #{tpu_custom_call.1} parent=39 // pred_check
          %p2661 = pneg %p109
        $region42: #{tpu_custom_call.1} parent=39 // pred_check_branch
          %2663 = sbr.rel (%p2661) target = $region44
        $region43: #{tpu_custom_call.1} parent=39 // pred_region
          %s2664 = sand.u32 %s94, 1
          %s2665 = scalar_lea.sflag [#allocation5], %s2664
          %s2666 = sand.u32 %s94, 1
          %s2667 = smul.addr %s2666, 48
          %s2668 = scalar_lea.vmem [#allocation4], %s2667
          %2670 = dma.done %s2665, 768
        $region44: #{tpu_custom_call.1} parent=39 // pred_fallthru
          _
      $region40: #{tpu_custom_call.1} parent=5 // pred_fallthru
        _
    $region6: #{tpu_custom_call.1} parent=1 // loop_footer
      %s16 = sadd.s32 1, %s12
    $region7: #{tpu_custom_call.1} parent=1 // loop_footer_branch
      %11 = sbr.rel target = $region3
    $region8: #{tpu_custom_call.1} parent=1 // loop_exit
      _
    %2671 = vsyncpa [#allocation5], 1
    %s2672 = scalar_lea.sflag [#allocation5], 1
    %2673 = vsyncpa %s2672, 1

</llo_original>
